<compile_context>
chip_gen: v5e
topology: v5e:2x2
jax: 0.10.0
libtpu: 0.0.40
codegen_flags: <defaults>
</compile_context>

<pallas_src>
import functools
import numpy as np
import jax
import jax.numpy as jnp
from jax.experimental import pallas as pl
from jax.experimental.pallas import tpu as pltpu


def _make_divisible(v, divisor, min_value=None):
    if min_value is None:
        min_value = divisor
    new_v = max(min_value, int(v + divisor / 2) // divisor * divisor)
    if new_v < 0.9 * v:
        new_v += divisor
    return new_v


def _round_up(v, m):
    return ((v + m - 1) // m) * m


# Column-tap order of the lane-concatenated input: CENTER (dx=1) first so the
# residual input x is the lane-aligned prefix of the dy=1 slab in the kernel.
_DX_ORDER = (1, 0, 2)


# ----------------------------- Pallas kernel ------------------------------- #
def fused_mbconv_kernel(xw_ref, w3_ref, bn1s_ref, bn1b_ref, *rest,
                        nin, use_se, use_residual, identity_map):
    idx = 0
    if use_se:
        sew1_ref, seb1_ref, sew2_ref, seb2_ref = rest[idx:idx + 4]
        idx += 4
    pww_ref, bn2s_ref, bn2b_ref = rest[idx:idx + 3]
    idx += 3
    if use_residual and not identity_map:
        mapw_ref = rest[idx]
        idx += 1
    out_ref = rest[idx]

    b_tile = xw_ref.shape[0]
    H = xw_ref.shape[1] - 2
    W = xw_ref.shape[2]
    k3 = xw_ref.shape[3]                      # 3 * nin (dx-concatenated lanes)
    hw = H * W
    m = b_tile * hw
    E_p = w3_ref.shape[-1]
    nout_p = out_ref.shape[-1]

    # ---- 3x3 expansion conv as 3 accumulating MXU matmuls (K = 3*nin) -------
    # Row taps dy = 0..2 are free major-dim slices of the haloed block; the
    # reshape is a pure leading-dim merge (relayout-free when W % 8 == 0).
    slabs = [xw_ref[:, dy:dy + H, :, :].reshape(m, k3) for dy in range(3)]
    acc = jnp.dot(slabs[0], w3_ref[0], preferred_element_type=jnp.float32)
    acc = acc + jnp.dot(slabs[1], w3_ref[1], preferred_element_type=jnp.float32)
    acc = acc + jnp.dot(slabs[2], w3_ref[2], preferred_element_type=jnp.float32)

    # ---- BN1 (inference affine; conv bias folded) + SiLU, f32 epilogue ------
    h = acc * bn1s_ref[...] + bn1b_ref[...]
    h = h * jax.nn.sigmoid(h)                                    # (m, E_p) f32

    # ---- squeeze & excitation: XLU pool + tiny MLP + VPU broadcast ----------
    if use_se:
        h3 = h.reshape(b_tile, hw, E_p)
        pooled = jnp.mean(h3, axis=1)                            # (b_tile, E_p)
        s = jnp.dot(pooled, sew1_ref[...],
                    preferred_element_type=jnp.float32) + seb1_ref[...]
        s = jnp.maximum(s, 0.0)
        s = jnp.dot(s, sew2_ref[...],
                    preferred_element_type=jnp.float32) + seb2_ref[...]
        scale = jax.nn.sigmoid(s)                                # (b_tile, E_p)
        h = (h3 * scale[:, None, :]).reshape(m, E_p)

    # Single downcast: the pointwise matmul consumes the MXU dtype (bf16).
    h = h.astype(pww_ref.dtype)

    # ---- pointwise 1x1 conv (lane-padded to nout_p) + BN2 -------------------
    o = jnp.dot(h, pww_ref[...], preferred_element_type=jnp.float32)
    o = o * bn2s_ref[...] + bn2b_ref[...]

    # ---- residual (stride == 1) ----------------------------------------------
    if use_residual:
        res = slabs[1][:, :nin]      # center tap (dy=1, dx=1): aligned prefix
        if identity_map:
            res = res.astype(jnp.float32)
            if nout_p > nin:
                res = jnp.concatenate(
                    [res, jnp.zeros((m, nout_p - nin), jnp.float32)], axis=-1)
            o = o + res                                          # free VPU add
        else:
            o = o + jnp.dot(res, mapw_ref[...],
                            preferred_element_type=jnp.float32)  # K = nin

    # Lane-dense (nout_p multiple of 128) unmasked store; bf16 writeback.
    out_ref[...] = o.reshape(b_tile, hw, nout_p).astype(out_ref.dtype)


# ------------------------------- wrapper ------------------------------------ #
@functools.partial(jax.jit,
                   static_argnames=("stride", "se", "mxu_dtype", "batch_tile"))
def fused_mbconv_forward(x_nchw, p, *, stride, se=True,
                         mxu_dtype=jnp.bfloat16, batch_tile=None):
    N, nin, H, W = x_nchw.shape
    E = p['bn1s'].shape[0]
    nout = p['bn2s'].shape[0]
    hw = H * W
    k3 = 3 * nin
    E_p = _round_up(E, 128)
    nout_p = _round_up(nout, 128)
    use_residual = (stride == 1)
    identity_map = use_residual and (nin == nout)
    itemsize = jnp.dtype(mxu_dtype).itemsize

    # ---- grid sizing: >= 2 steps (v7x megacore + pipeline overlap) ----------
    if batch_tile is None:
        batch_tile = 1 if N <= 8 else min(8, pl.cdiv(N, 8))
    batch_tile = max(1, min(batch_tile, N))

    def _step_vmem_bytes(bt):
        m = bt * hw
        k3_l = _round_up(k3, 128)              # lane-padded VMEM footprint
        blk_in = bt * (H + 2) * _round_up(W, 8) * k3_l * itemsize
        blk_out = bt * hw * nout_p * itemsize
        inter = m * (2 * E_p * 4 + nout_p * 4 + 3 * k3_l * itemsize)
        return 2 * (blk_in + blk_out) + inter

    while batch_tile > 1 and _step_vmem_bytes(batch_tile) > 40 * 1024 * 1024:
        batch_tile //= 2
    # TODO(synk): at very large H*W a single image may still not fit; needs an
    #             hw grid axis + two-phase SE (see header).

    # ---- input prep: NHWC, spatial zero-pad, 3 column taps (center first) ---
    x = jnp.transpose(x_nchw, (0, 2, 3, 1)).astype(mxu_dtype)        # NHWC
    xp = jnp.pad(x, ((0, 0), (1, 1), (1, 1), (0, 0)))                # (N,H+2,W+2,nin)
    xw = jnp.concatenate([xp[:, :, dx:dx + W, :] for dx in _DX_ORDER],
                         axis=-1)                                    # (N,H+2,W,3*nin)

    # ---- lane-pad E / nout so all matmul outputs & stores are dense ---------
    epad, opad = E_p - E, nout_p - nout
    w3 = jnp.pad(p['w3'], ((0, 0), (0, 0), (0, epad))).astype(mxu_dtype)
    bn1s = jnp.pad(p['bn1s'], (0, epad)).reshape(1, E_p)
    bn1b = jnp.pad(p['bn1b'], (0, epad)).reshape(1, E_p)
    pww = jnp.pad(p['pww'], ((0, epad), (0, opad))).astype(mxu_dtype)
    bn2s = jnp.pad(p['bn2s'], (0, opad)).reshape(1, nout_p)
    bn2b = jnp.pad(p['bn2b'], (0, opad)).reshape(1, nout_p)

    args = [xw, w3, bn1s, bn1b]
    if se:
        sq = p['seb1'].shape[0]
        args += [jnp.pad(p['sew1'], ((0, epad), (0, 0))),             # (E_p, sq)
                 p['seb1'].reshape(1, sq),
                 jnp.pad(p['sew2'], ((0, 0), (0, epad))),             # (sq, E_p)
                 jnp.pad(p['seb2'], (0, epad)).reshape(1, E_p)]
    args += [pww, bn2s, bn2b]
    if use_residual and not identity_map:
        args.append(jnp.pad(p['mapw'], ((0, 0), (0, opad))).astype(mxu_dtype))

    def const_spec(a):
        return pl.BlockSpec(a.shape, lambda b, n=a.ndim: (0,) * n)

    in_specs = ([pl.BlockSpec((batch_tile, H + 2, W, k3),
                              lambda b: (b, 0, 0, 0))]
                + [const_spec(a) for a in args[1:]])

    kernel = functools.partial(fused_mbconv_kernel, nin=nin, use_se=se,
                               use_residual=use_residual,
                               identity_map=identity_map)

    # advisory cost model for XLA's scheduler
    flops = 2 * N * hw * (9 * nin) * E_p + 2 * N * hw * E_p * nout_p
    if use_residual and not identity_map:
        flops += 2 * N * hw * nin * nout_p
    transcendentals = N * hw * E_p + (N * E_p if se else 0)
    bytes_accessed = int(sum(int(np.prod(a.shape)) * a.dtype.itemsize
                             for a in args) + N * hw * nout_p * itemsize)

    out = pl.pallas_call(
        kernel,
        out_shape=jax.ShapeDtypeStruct((N, hw, nout_p), mxu_dtype),
        grid=(pl.cdiv(N, batch_tile),),
        in_specs=in_specs,
        out_specs=pl.BlockSpec((batch_tile, hw, nout_p), lambda b: (b, 0, 0)),
        compiler_params=pltpu.CompilerParams(
            dimension_semantics=("parallel",),
            # explicit scoped-VMEM cap: safe under v7x's 64 MiB physical VMEM;
            # can be raised toward ~100 MiB when tuning on v5e/v6e.
            vmem_limit_bytes=48 * 1024 * 1024),
        cost_estimate=pl.CostEstimate(flops=flops,
                                      transcendentals=transcendentals,
                                      bytes_accessed=bytes_accessed),
    )(*args)

    out = out[:, :, :nout].reshape(N, H, W, nout)
    return jnp.transpose(out, (0, 3, 1, 2))                          # NCHW


# ------------------------- deterministic parameters ------------------------- #
def init_params(key, nin, nout, expansion_ratio=4, eps=1e-5):
    expand = expansion_ratio * nout
    sq = _make_divisible(expand // 4, 8)
    ks = jax.random.split(key, 18)
    g = lambda k, shape, s=0.1: jax.random.normal(k, shape, jnp.float32) * s

    # expansion 3x3 conv (torch OIHW) + BN1
    w3_t = g(ks[0], (expand, nin, 3, 3), 0.2)
    b3 = g(ks[1], (expand,))
    g1 = 1.0 + 0.1 * jax.random.normal(ks[2], (expand,), jnp.float32)
    be1 = g(ks[3], (expand,))
    m1 = g(ks[4], (expand,))
    v1 = 1.0 + 0.1 * jnp.abs(jax.random.normal(ks[5], (expand,), jnp.float32))
    # squeeze-excitation (1x1 convs)
    sew1_t = g(ks[6], (sq, expand), 0.2)
    seb1 = g(ks[7], (sq,))
    sew2_t = g(ks[8], (expand, sq), 0.2)
    seb2 = g(ks[9], (expand,))
    # pointwise 1x1 conv + BN2
    pww_t = g(ks[10], (nout, expand), 0.2)
    pwb = g(ks[11], (nout,))
    g2 = 1.0 + 0.1 * jax.random.normal(ks[12], (nout,), jnp.float32)
    be2 = g(ks[13], (nout,))
    m2 = g(ks[14], (nout,))
    v2 = 1.0 + 0.1 * jnp.abs(jax.random.normal(ks[15], (nout,), jnp.float32))
    # residual map (identity if nin == nout, else 1x1 conv without bias)
    if nin == nout:
        mapw = jnp.eye(nin, dtype=jnp.float32)                       # (nin, nout)
    else:
        mapw = g(ks[16], (nout, nin), 0.2).T                         # (nin, nout)

    bn1s = g1 / jnp.sqrt(v1 + eps)
    bn1b = be1 - m1 * bn1s + b3 * bn1s
    bn2s = g2 / jnp.sqrt(v2 + eps)
    bn2b = be2 - m2 * bn2s + pwb * bn2s

    # kernel weight layout: (3 row-taps dy, 3*nin dx-concatenated channels, E)
    # with dx order (1, 0, 2) matching the wrapper's lane concatenation.
    w3_k = jnp.stack(
        [jnp.concatenate([w3_t[:, :, dy, dx].T for dx in _DX_ORDER], axis=0)
         for dy in range(3)], axis=0)                                # (3, 3*nin, E)

    kernel_params = dict(
        w3=w3_k, bn1s=bn1s, bn1b=bn1b,
        sew1=sew1_t.T, seb1=seb1, sew2=sew2_t.T, seb2=seb2,
        pww=pww_t.T, bn2s=bn2s, bn2b=bn2b, mapw=mapw)
    raw = dict(w3_t=w3_t, b3=b3, g1=g1, be1=be1, m1=m1, v1=v1,
               sew1_t=sew1_t, seb1=seb1, sew2_t=sew2_t, seb2=seb2,
               pww_t=pww_t, pwb=pwb, g2=g2, be2=be2, m2=m2, v2=v2, mapw=mapw)
    return kernel_params, raw


# ------------------------------ JAX reference ------------------------------- #
def reference_forward(x_nchw, raw, *, stride, se=True, eps=1e-5):
    x = jnp.transpose(x_nchw, (0, 2, 3, 1)).astype(jnp.float32)
    w_hwio = jnp.transpose(raw['w3_t'], (2, 3, 1, 0))
    out = jax.lax.conv_general_dilated(
        x, w_hwio, (1, 1), ((1, 1), (1, 1)),
        dimension_numbers=('NHWC', 'HWIO', 'NHWC')) + raw['b3']
    out = (out - raw['m1']) / jnp.sqrt(raw['v1'] + eps) * raw['g1'] + raw['be1']
    out = out * jax.nn.sigmoid(out)
    if se:
        pooled = jnp.mean(out, axis=(1, 2), keepdims=True)
        s = jnp.einsum('nhwc,kc->nhwk', pooled, raw['sew1_t']) + raw['seb1']
        s = jnp.maximum(s, 0.0)
        s = jnp.einsum('nhwk,ck->nhwc', s, raw['sew2_t']) + raw['seb2']
        out = out * jax.nn.sigmoid(s)
    o = jnp.einsum('nhwc,oc->nhwo', out, raw['pww_t']) + raw['pwb']
    o = (o - raw['m2']) / jnp.sqrt(raw['v2'] + eps) * raw['g2'] + raw['be2']
    if stride == 1:
        o = o + jnp.einsum('nhwc,co->nhwo', x, raw['mapw'])
    return jnp.transpose(o, (0, 3, 1, 2))


if __name__ == "__main__":
    key = jax.random.PRNGKey(0)
    N, H, W = 2, 16, 16
    configs = [
        # (nin, nout, stride, se)
        (4, 8, 1, True),     # learned 1x1 residual map + SE
        (8, 8, 1, True),     # identity residual (VPU add) + SE
        (8, 16, 2, False),   # no residual, no SE
    ]
    for nin, nout, stride, se in configs:
        key, k_x, k_p = jax.random.split(key, 3)
        x = jax.random.normal(k_x, (N, nin, H, W), jnp.float32)
        params, raw = init_params(k_p, nin, nout)

        ref = jax.block_until_ready(
            reference_forward(x, raw, stride=stride, se=se))

        # f32 MXU operands: tight check of indexing / weight layout / SE math.
        out_f32 = jax.block_until_ready(
            fused_mbconv_forward(x, params, stride=stride, se=se,
                                 mxu_dtype=jnp.float32))
        np.testing.assert_allclose(np.asarray(out_f32), np.asarray(ref),
                                   rtol=1e-3, atol=1e-3)

        # Default fast path: bf16 MXU operands / bf16 writeback, f32 epilogue.
        out_bf16 = jax.block_until_ready(
            fused_mbconv_forward(x, params, stride=stride, se=se))
        np.testing.assert_allclose(
            np.asarray(out_bf16).astype(np.float32), np.asarray(ref),
            rtol=3e-2, atol=3e-2)

    print("KERNEL_OK")
</pallas_src>

<mosaic_0001>
module attributes {stable_mosaic.version = 11 : i64} {
  func.func @fused_mbconv_kernel(%arg0: i32, %arg1: memref<1x18x16x12xf32, #tpu.memory_space<vmem>>, %arg2: memref<3x12x128xf32, #tpu.memory_space<vmem>>, %arg3: memref<1x128xf32, #tpu.memory_space<vmem>>, %arg4: memref<1x128xf32, #tpu.memory_space<vmem>>, %arg5: memref<128x8xf32, #tpu.memory_space<vmem>>, %arg6: memref<1x8xf32, #tpu.memory_space<vmem>>, %arg7: memref<8x128xf32, #tpu.memory_space<vmem>>, %arg8: memref<1x128xf32, #tpu.memory_space<vmem>>, %arg9: memref<128x128xf32, #tpu.memory_space<vmem>>, %arg10: memref<1x128xf32, #tpu.memory_space<vmem>>, %arg11: memref<1x128xf32, #tpu.memory_space<vmem>>, %arg12: memref<4x128xf32, #tpu.memory_space<vmem>>, %arg13: memref<1x256x128xf32, #tpu.memory_space<vmem>>) attributes {dimension_semantics = [#tpu.dimension_semantics<parallel>], iteration_bounds = array<i64: 2>, scalar_prefetch = 0 : i64, scratch_operands = 0 : i64, tpu.core_type = #tpu.core_type<tc>, window_params = [{transform_indices = @transform_0, window_bounds = array<i64: 1, 18, 16, 12>}, {pipeline_mode = #tpu.pipeline_mode<synchronous>, transform_indices = @transform_1, window_bounds = array<i64: 3, 12, 128>}, {pipeline_mode = #tpu.pipeline_mode<synchronous>, transform_indices = @transform_2, window_bounds = array<i64: 1, 128>}, {pipeline_mode = #tpu.pipeline_mode<synchronous>, transform_indices = @transform_3, window_bounds = array<i64: 1, 128>}, {pipeline_mode = #tpu.pipeline_mode<synchronous>, transform_indices = @transform_4, window_bounds = array<i64: 128, 8>}, {pipeline_mode = #tpu.pipeline_mode<synchronous>, transform_indices = @transform_5, window_bounds = array<i64: 1, 8>}, {pipeline_mode = #tpu.pipeline_mode<synchronous>, transform_indices = @transform_6, window_bounds = array<i64: 8, 128>}, {pipeline_mode = #tpu.pipeline_mode<synchronous>, transform_indices = @transform_7, window_bounds = array<i64: 1, 128>}, {pipeline_mode = #tpu.pipeline_mode<synchronous>, transform_indices = @transform_8, window_bounds = array<i64: 128, 128>}, {pipeline_mode = #tpu.pipeline_mode<synchronous>, transform_indices = @transform_9, window_bounds = array<i64: 1, 128>}, {pipeline_mode = #tpu.pipeline_mode<synchronous>, transform_indices = @transform_10, window_bounds = array<i64: 1, 128>}, {pipeline_mode = #tpu.pipeline_mode<synchronous>, transform_indices = @transform_11, window_bounds = array<i64: 4, 128>}, {transform_indices = @transform_12, window_bounds = array<i64: 1, 256, 128>}]} {
    %c0 = arith.constant 0 : index
    %c0_0 = arith.constant 0 : index
    %c0_1 = arith.constant 0 : index
    %c0_2 = arith.constant 0 : index
    %0 = vector.load %arg1[%c0, %c0_0, %c0_1, %c0_2] : memref<1x18x16x12xf32, #tpu.memory_space<vmem>>, vector<1x16x16x12xf32>
    %1 = vector.shape_cast %0 : vector<1x16x16x12xf32> to vector<256x12xf32>
    %c0_3 = arith.constant 0 : index
    %c1 = arith.constant 1 : index
    %c0_4 = arith.constant 0 : index
    %c0_5 = arith.constant 0 : index
    %2 = vector.load %arg1[%c0_3, %c1, %c0_4, %c0_5] : memref<1x18x16x12xf32, #tpu.memory_space<vmem>>, vector<1x16x16x12xf32>
    %3 = vector.shape_cast %2 : vector<1x16x16x12xf32> to vector<256x12xf32>
    %c0_6 = arith.constant 0 : index
    %c2 = arith.constant 2 : index
    %c0_7 = arith.constant 0 : index
    %c0_8 = arith.constant 0 : index
    %4 = vector.load %arg1[%c0_6, %c2, %c0_7, %c0_8] : memref<1x18x16x12xf32, #tpu.memory_space<vmem>>, vector<1x16x16x12xf32>
    %5 = vector.shape_cast %4 : vector<1x16x16x12xf32> to vector<256x12xf32>
    %c0_9 = arith.constant 0 : index
    %c0_10 = arith.constant 0 : index
    %c0_11 = arith.constant 0 : index
    %6 = vector.load %arg2[%c0_9, %c0_10, %c0_11] : memref<3x12x128xf32, #tpu.memory_space<vmem>>, vector<1x12x128xf32>
    %7 = vector.shape_cast %6 : vector<1x12x128xf32> to vector<12x128xf32>
    %cst = arith.constant dense<0.000000e+00> : vector<256x128xf32>
    %8 = tpu.matmul %1, %7, %cst {dimension_numbers = #tpu.dot_dimension_numbers<[1], [0], [0], [1], [0, 0, 1, 1], [], []>} : vector<256x12xf32>, vector<12x128xf32>, vector<256x128xf32> -> vector<256x128xf32>
    %c1_12 = arith.constant 1 : index
    %c0_13 = arith.constant 0 : index
    %c0_14 = arith.constant 0 : index
    %9 = vector.load %arg2[%c1_12, %c0_13, %c0_14] : memref<3x12x128xf32, #tpu.memory_space<vmem>>, vector<1x12x128xf32>
    %10 = vector.shape_cast %9 : vector<1x12x128xf32> to vector<12x128xf32>
    %cst_15 = arith.constant dense<0.000000e+00> : vector<256x128xf32>
    %11 = tpu.matmul %3, %10, %cst_15 {dimension_numbers = #tpu.dot_dimension_numbers<[1], [0], [0], [1], [0, 0, 1, 1], [], []>} : vector<256x12xf32>, vector<12x128xf32>, vector<256x128xf32> -> vector<256x128xf32>
    %12 = arith.addf %8, %11 : vector<256x128xf32>
    %c2_16 = arith.constant 2 : index
    %c0_17 = arith.constant 0 : index
    %c0_18 = arith.constant 0 : index
    %13 = vector.load %arg2[%c2_16, %c0_17, %c0_18] : memref<3x12x128xf32, #tpu.memory_space<vmem>>, vector<1x12x128xf32>
    %14 = vector.shape_cast %13 : vector<1x12x128xf32> to vector<12x128xf32>
    %cst_19 = arith.constant dense<0.000000e+00> : vector<256x128xf32>
    %15 = tpu.matmul %5, %14, %cst_19 {dimension_numbers = #tpu.dot_dimension_numbers<[1], [0], [0], [1], [0, 0, 1, 1], [], []>} : vector<256x12xf32>, vector<12x128xf32>, vector<256x128xf32> -> vector<256x128xf32>
    %16 = arith.addf %12, %15 : vector<256x128xf32>
    %c0_20 = arith.constant 0 : index
    %c0_21 = arith.constant 0 : index
    %17 = vector.load %arg3[%c0_20, %c0_21] : memref<1x128xf32, #tpu.memory_space<vmem>>, vector<1x128xf32>
    %18 = vector.broadcast %17 : vector<1x128xf32> to vector<256x128xf32>
    %19 = arith.mulf %16, %18 : vector<256x128xf32>
    %c0_22 = arith.constant 0 : index
    %c0_23 = arith.constant 0 : index
    %20 = vector.load %arg4[%c0_22, %c0_23] : memref<1x128xf32, #tpu.memory_space<vmem>>, vector<1x128xf32>
    %21 = vector.broadcast %20 : vector<1x128xf32> to vector<256x128xf32>
    %22 = arith.addf %19, %21 : vector<256x128xf32>
    %23 = arith.negf %22 : vector<256x128xf32>
    %24 = math.exp %23 : vector<256x128xf32>
    %cst_24 = arith.constant 1.000000e+00 : f32
    %25 = vector.broadcast %cst_24 : f32 to vector<256x128xf32>
    %26 = arith.addf %25, %24 : vector<256x128xf32>
    %27 = arith.divf %25, %26 : vector<256x128xf32>
    %28 = arith.mulf %22, %27 : vector<256x128xf32>
    %29 = vector.shape_cast %28 : vector<256x128xf32> to vector<1x256x128xf32>
    %cst_25 = arith.constant dense<0.000000e+00> : vector<1x128xf32>
    %30 = vector.multi_reduction <add>, %29, %cst_25 [1] : vector<1x256x128xf32> to vector<1x128xf32>
    %cst_26 = arith.constant 2.560000e+02 : f32
    %31 = vector.broadcast %cst_26 : f32 to vector<1x128xf32>
    %32 = arith.divf %30, %31 : vector<1x128xf32>
    %c0_27 = arith.constant 0 : index
    %c0_28 = arith.constant 0 : index
    %33 = vector.load %arg5[%c0_27, %c0_28] : memref<128x8xf32, #tpu.memory_space<vmem>>, vector<128x8xf32>
    %cst_29 = arith.constant dense<0.000000e+00> : vector<1x8xf32>
    %34 = tpu.matmul %32, %33, %cst_29 {dimension_numbers = #tpu.dot_dimension_numbers<[1], [0], [0], [1], [0, 0, 1, 1], [], []>} : vector<1x128xf32>, vector<128x8xf32>, vector<1x8xf32> -> vector<1x8xf32>
    %c0_30 = arith.constant 0 : index
    %c0_31 = arith.constant 0 : index
    %35 = vector.load %arg6[%c0_30, %c0_31] : memref<1x8xf32, #tpu.memory_space<vmem>>, vector<1x8xf32>
    %36 = arith.addf %34, %35 : vector<1x8xf32>
    %cst_32 = arith.constant 0.000000e+00 : f32
    %37 = vector.broadcast %cst_32 : f32 to vector<1x8xf32>
    %38 = arith.maximumf %36, %37 : vector<1x8xf32>
    %c0_33 = arith.constant 0 : index
    %c0_34 = arith.constant 0 : index
    %39 = vector.load %arg7[%c0_33, %c0_34] : memref<8x128xf32, #tpu.memory_space<vmem>>, vector<8x128xf32>
    %cst_35 = arith.constant dense<0.000000e+00> : vector<1x128xf32>
    %40 = tpu.matmul %38, %39, %cst_35 {dimension_numbers = #tpu.dot_dimension_numbers<[1], [0], [0], [1], [0, 0, 1, 1], [], []>} : vector<1x8xf32>, vector<8x128xf32>, vector<1x128xf32> -> vector<1x128xf32>
    %c0_36 = arith.constant 0 : index
    %c0_37 = arith.constant 0 : index
    %41 = vector.load %arg8[%c0_36, %c0_37] : memref<1x128xf32, #tpu.memory_space<vmem>>, vector<1x128xf32>
    %42 = arith.addf %40, %41 : vector<1x128xf32>
    %43 = arith.negf %42 : vector<1x128xf32>
    %44 = math.exp %43 : vector<1x128xf32>
    %cst_38 = arith.constant 1.000000e+00 : f32
    %45 = vector.broadcast %cst_38 : f32 to vector<1x128xf32>
    %46 = arith.addf %45, %44 : vector<1x128xf32>
    %47 = arith.divf %45, %46 : vector<1x128xf32>
    %48 = vector.shape_cast %47 : vector<1x128xf32> to vector<1x1x128xf32>
    %49 = vector.broadcast %48 : vector<1x1x128xf32> to vector<1x256x128xf32>
    %50 = arith.mulf %29, %49 : vector<1x256x128xf32>
    %51 = vector.shape_cast %50 : vector<1x256x128xf32> to vector<256x128xf32>
    %c0_39 = arith.constant 0 : index
    %c0_40 = arith.constant 0 : index
    %52 = vector.load %arg9[%c0_39, %c0_40] : memref<128x128xf32, #tpu.memory_space<vmem>>, vector<128x128xf32>
    %cst_41 = arith.constant dense<0.000000e+00> : vector<256x128xf32>
    %53 = tpu.matmul %51, %52, %cst_41 {dimension_numbers = #tpu.dot_dimension_numbers<[1], [0], [0], [1], [0, 0, 1, 1], [], []>} : vector<256x128xf32>, vector<128x128xf32>, vector<256x128xf32> -> vector<256x128xf32>
    %c0_42 = arith.constant 0 : index
    %c0_43 = arith.constant 0 : index
    %54 = vector.load %arg10[%c0_42, %c0_43] : memref<1x128xf32, #tpu.memory_space<vmem>>, vector<1x128xf32>
    %55 = vector.broadcast %54 : vector<1x128xf32> to vector<256x128xf32>
    %56 = arith.mulf %53, %55 : vector<256x128xf32>
    %c0_44 = arith.constant 0 : index
    %c0_45 = arith.constant 0 : index
    %57 = vector.load %arg11[%c0_44, %c0_45] : memref<1x128xf32, #tpu.memory_space<vmem>>, vector<1x128xf32>
    %58 = vector.broadcast %57 : vector<1x128xf32> to vector<256x128xf32>
    %59 = arith.addf %56, %58 : vector<256x128xf32>
    %60 = vector.extract_strided_slice %3 {offsets = [0, 0], sizes = [256, 4], strides = [1, 1]} : vector<256x12xf32> to vector<256x4xf32>
    %c0_46 = arith.constant 0 : index
    %c0_47 = arith.constant 0 : index
    %61 = vector.load %arg12[%c0_46, %c0_47] : memref<4x128xf32, #tpu.memory_space<vmem>>, vector<4x128xf32>
    %cst_48 = arith.constant dense<0.000000e+00> : vector<256x128xf32>
    %62 = tpu.matmul %60, %61, %cst_48 {dimension_numbers = #tpu.dot_dimension_numbers<[1], [0], [0], [1], [0, 0, 1, 1], [], []>} : vector<256x4xf32>, vector<4x128xf32>, vector<256x128xf32> -> vector<256x128xf32>
    %63 = arith.addf %59, %62 : vector<256x128xf32>
    %64 = vector.shape_cast %63 : vector<256x128xf32> to vector<1x256x128xf32>
    %c0_49 = arith.constant 0 : index
    %c0_50 = arith.constant 0 : index
    %c0_51 = arith.constant 0 : index
    %65 = vector.load %arg13[%c0_49, %c0_50, %c0_51] : memref<1x256x128xf32, #tpu.memory_space<vmem>>, vector<1x256x128xf32>
    tpu.vector_store %arg13[%c0_49, %c0_50, %c0_51], %64 {strides = array<i32>} : memref<1x256x128xf32, #tpu.memory_space<vmem>>, vector<1x256x128xf32>,
    return
  }
  func.func @transform_0(%arg0: i32) -> (i32, i32, i32, i32) {
    %c0_i32 = arith.constant 0 : i32
    %c0_i32_0 = arith.constant 0 : i32
    %c0_i32_1 = arith.constant 0 : i32
    %c0_i32_2 = arith.constant 0 : i32
    return %arg0, %c0_i32, %c0_i32_0, %c0_i32_1 : i32, i32, i32, i32
  }
  func.func @transform_1(%arg0: i32) -> (i32, i32, i32) {
    %c0_i32 = arith.constant 0 : i32
    %c0_i32_0 = arith.constant 0 : i32
    %c0_i32_1 = arith.constant 0 : i32
    %c0_i32_2 = arith.constant 0 : i32
    return %c0_i32, %c0_i32_0, %c0_i32_1 : i32, i32, i32
  }
  func.func @transform_2(%arg0: i32) -> (i32, i32) {
    %c0_i32 = arith.constant 0 : i32
    %c0_i32_0 = arith.constant 0 : i32
    %c0_i32_1 = arith.constant 0 : i32
    return %c0_i32, %c0_i32_0 : i32, i32
  }
  func.func @transform_3(%arg0: i32) -> (i32, i32) {
    %c0_i32 = arith.constant 0 : i32
    %c0_i32_0 = arith.constant 0 : i32
    %c0_i32_1 = arith.constant 0 : i32
    return %c0_i32, %c0_i32_0 : i32, i32
  }
  func.func @transform_4(%arg0: i32) -> (i32, i32) {
    %c0_i32 = arith.constant 0 : i32
    %c0_i32_0 = arith.constant 0 : i32
    %c0_i32_1 = arith.constant 0 : i32
    return %c0_i32, %c0_i32_0 : i32, i32
  }
  func.func @transform_5(%arg0: i32) -> (i32, i32) {
    %c0_i32 = arith.constant 0 : i32
    %c0_i32_0 = arith.constant 0 : i32
    %c0_i32_1 = arith.constant 0 : i32
    return %c0_i32, %c0_i32_0 : i32, i32
  }
  func.func @transform_6(%arg0: i32) -> (i32, i32) {
    %c0_i32 = arith.constant 0 : i32
    %c0_i32_0 = arith.constant 0 : i32
    %c0_i32_1 = arith.constant 0 : i32
    return %c0_i32, %c0_i32_0 : i32, i32
  }
  func.func @transform_7(%arg0: i32) -> (i32, i32) {
    %c0_i32 = arith.constant 0 : i32
    %c0_i32_0 = arith.constant 0 : i32
    %c0_i32_1 = arith.constant 0 : i32
    return %c0_i32, %c0_i32_0 : i32, i32
  }
  func.func @transform_8(%arg0: i32) -> (i32, i32) {
    %c0_i32 = arith.constant 0 : i32
    %c0_i32_0 = arith.constant 0 : i32
    %c0_i32_1 = arith.constant 0 : i32
    return %c0_i32, %c0_i32_0 : i32, i32
  }
  func.func @transform_9(%arg0: i32) -> (i32, i32) {
    %c0_i32 = arith.constant 0 : i32
    %c0_i32_0 = arith.constant 0 : i32
    %c0_i32_1 = arith.constant 0 : i32
    return %c0_i32, %c0_i32_0 : i32, i32
  }
  func.func @transform_10(%arg0: i32) -> (i32, i32) {
    %c0_i32 = arith.constant 0 : i32
    %c0_i32_0 = arith.constant 0 : i32
    %c0_i32_1 = arith.constant 0 : i32
    return %c0_i32, %c0_i32_0 : i32, i32
  }
  func.func @transform_11(%arg0: i32) -> (i32, i32) {
    %c0_i32 = arith.constant 0 : i32
    %c0_i32_0 = arith.constant 0 : i32
    %c0_i32_1 = arith.constant 0 : i32
    return %c0_i32, %c0_i32_0 : i32, i32
  }
  func.func @transform_12(%arg0: i32) -> (i32, i32, i32) {
    %c0_i32 = arith.constant 0 : i32
    %c0_i32_0 = arith.constant 0 : i32
    %c0_i32_1 = arith.constant 0 : i32
    return %arg0, %c0_i32, %c0_i32_0 : i32, i32, i32
  }
}

</mosaic_0001>

<llo_original>
// kernel: fused_mbconv_forward.1
$region0: #{fused_mbconv_forward.1}
  #allocation0 [shape = 'u32[]', space=smem, size = 0x4, offset = 0x4, fixed_abs, tag = 'smem constant byte address 0x4 - core index']
  #allocation1 [shape = 'u32[72,128]{1,0:T(1,128)}', space=vmem, size = 0x9000, scoped, tag = 'internal scratch']
  %s0 = inlined_call_operand.vmem [shape: f32[2,18,16,12], index: 0, kind: input, shape index: {}]
  %s1 = inlined_call_operand.vmem [shape: f32[3,12,128], index: 1, kind: input, shape index: {}]
  %s2 = inlined_call_operand.vmem [shape: f32[1,128], index: 2, kind: input, shape index: {}]
  %s3 = inlined_call_operand.vmem [shape: f32[1,128], index: 3, kind: input, shape index: {}]
  %s4 = inlined_call_operand.vmem [shape: f32[128,8], index: 4, kind: input, shape index: {}]
  %s5 = inlined_call_operand.vmem [shape: f32[1,8], index: 5, kind: input, shape index: {}]
  %s6 = inlined_call_operand.vmem [shape: f32[8,128], index: 6, kind: input, shape index: {}]
  %s7 = inlined_call_operand.vmem [shape: f32[1,128], index: 7, kind: input, shape index: {}]
  %s8 = inlined_call_operand.vmem [shape: f32[128,128], index: 8, kind: input, shape index: {}]
  %s9 = inlined_call_operand.vmem [shape: f32[1,128], index: 9, kind: input, shape index: {}]
  %s10 = inlined_call_operand.vmem [shape: f32[1,128], index: 10, kind: input, shape index: {}]
  %s11 = inlined_call_operand.vmem [shape: f32[4,128], index: 11, kind: input, shape index: {}]
  %s12 = inlined_call_operand.vmem [shape: f32[2,256,128], index: 12, kind: output, shape index: {}]
  %s13 = sld [smem:[#allocation0]]
  $region81: #{fused_mbconv_forward.1} parent=0
    _
  %s15 = ssub.s32 1, %s13
  %s16 = scalar_select 0, %s15, %s13
  loop: start=0, step=1, limit=4
  $region2: #{fused_mbconv_forward.1} parent=0 // loop_pre_header
    _
  $region3: #{fused_mbconv_forward.1} parent=0 // loop_header
    %s18 = sphi 0, %s22
    %p19 = scmp.ge.s32.totalorder %s18, 4
    %s28 = sphi 0, %s30
    %s31 = sphi 0, %s28
    %s32 = sphi 0, %s31
    %s48 = sphi 0, %s32
    %s52 = sphi 0, %s52
    %s54 = sphi 0, %s52
    %s55 = sphi 0, %s54
    %s69 = sphi 0, %s55
    %s73 = sphi 0, %s73
    %s75 = sphi 0, %s73
    %s76 = sphi 0, %s75
    %s90 = sphi 0, %s76
    %s94 = sphi 0, %s94
    %s96 = sphi 0, %s94
    %s97 = sphi 0, %s96
    %s111 = sphi 0, %s97
    %s115 = sphi 0, %s115
    %s117 = sphi 0, %s115
    %s118 = sphi 0, %s117
    %s132 = sphi 0, %s118
    %s136 = sphi 0, %s136
    %s138 = sphi 0, %s136
    %s139 = sphi 0, %s138
    %s153 = sphi 0, %s139
    %s157 = sphi 0, %s157
    %s159 = sphi 0, %s157
    %s160 = sphi 0, %s159
    %s174 = sphi 0, %s160
    %s178 = sphi 0, %s178
    %s180 = sphi 0, %s178
    %s181 = sphi 0, %s180
    %s195 = sphi 0, %s181
    %s199 = sphi 0, %s199
    %s201 = sphi 0, %s199
    %s202 = sphi 0, %s201
    %s216 = sphi 0, %s202
    %s220 = sphi 0, %s220
    %s222 = sphi 0, %s220
    %s223 = sphi 0, %s222
    %s237 = sphi 0, %s223
    %s241 = sphi 0, %s241
    %s243 = sphi 0, %s241
    %s244 = sphi 0, %s243
    %s258 = sphi 0, %s244
    %s262 = sphi 0, %s262
    %s264 = sphi 0, %s262
    %s265 = sphi 0, %s264
    %s279 = sphi 0, %s265
    %s285 = sphi 0, %s287
    %s288 = sphi 0, %s285
    %s289 = sphi 0, %s288
    %s305 = sphi 0, %s289
  $region4: #{fused_mbconv_forward.1} parent=0 // loop_header_branch
    %21 = sbr.rel (%p19) target = $region8
  $region5: #{fused_mbconv_forward.1} parent=0 // loop_body
    %s23 = ssub.s32 %s18, 1
    %s24 = ssub.s32 %s18, 2
    %s25 = sadd.s32 %s18, 1
    %s26 = ssub.s32 %s18, %s25
    %p27 = scmp.eq.s32.totalorder %s26, 0
    %s29 = sadd.s32 %s28, 1
    %s30 = scalar_select %p27, %s28, %s29
    %p33 = pneg %p27
    %p34 = scmp.eq.s32.totalorder %s18, 1
    %p35 = por %p33, %p34
    %p36 = scmp.ne.s32.totalorder %s28, %s31
    %p37 = scmp.eq.s32.totalorder %s18, 0
    %p38 = por %p36, %p37
    %p39 = scmp.ne.s32.totalorder %s28, %s31
    %p40 = scmp.eq.s32.totalorder %s23, 1
    %p41 = por %p39, %p40
    %p42 = scmp.ne.s32.totalorder %s31, %s32
    %p43 = scmp.eq.s32.totalorder %s23, 0
    %p44 = por %p42, %p43
    %p45 = scmp.ne.s32.totalorder %s31, %s32
    %p46 = scmp.eq.s32.totalorder %s24, 1
    %p47 = por %p45, %p46
    %p49 = scmp.ne.s32.totalorder %s32, %s48
    %p50 = scmp.eq.s32.totalorder %s24, 0
    %p51 = por %p49, %p50
    %s53 = sadd.s32 %s52, 1
    %p56 = scmp.eq.s32.totalorder %s18, 1
    %p57 = scmp.ne.s32.totalorder %s52, %s54
    %p58 = scmp.eq.s32.totalorder %s18, 0
    %p59 = por %p57, %p58
    %p60 = scmp.ne.s32.totalorder %s52, %s54
    %p61 = scmp.eq.s32.totalorder %s23, 1
    %p62 = por %p60, %p61
    %p63 = scmp.ne.s32.totalorder %s54, %s55
    %p64 = scmp.eq.s32.totalorder %s23, 0
    %p65 = por %p63, %p64
    %p66 = scmp.ne.s32.totalorder %s54, %s55
    %p67 = scmp.eq.s32.totalorder %s24, 1
    %p68 = por %p66, %p67
    %p70 = scmp.ne.s32.totalorder %s55, %s69
    %p71 = scmp.eq.s32.totalorder %s24, 0
    %p72 = por %p70, %p71
    %s74 = sadd.s32 %s73, 1
    %p77 = scmp.eq.s32.totalorder %s18, 1
    %p78 = scmp.ne.s32.totalorder %s73, %s75
    %p79 = scmp.eq.s32.totalorder %s18, 0
    %p80 = por %p78, %p79
    %p81 = scmp.ne.s32.totalorder %s73, %s75
    %p82 = scmp.eq.s32.totalorder %s23, 1
    %p83 = por %p81, %p82
    %p84 = scmp.ne.s32.totalorder %s75, %s76
    %p85 = scmp.eq.s32.totalorder %s23, 0
    %p86 = por %p84, %p85
    %p87 = scmp.ne.s32.totalorder %s75, %s76
    %p88 = scmp.eq.s32.totalorder %s24, 1
    %p89 = por %p87, %p88
    %p91 = scmp.ne.s32.totalorder %s76, %s90
    %p92 = scmp.eq.s32.totalorder %s24, 0
    %p93 = por %p91, %p92
    %s95 = sadd.s32 %s94, 1
    %p98 = scmp.eq.s32.totalorder %s18, 1
    %p99 = scmp.ne.s32.totalorder %s94, %s96
    %p100 = scmp.eq.s32.totalorder %s18, 0
    %p101 = por %p99, %p100
    %p102 = scmp.ne.s32.totalorder %s94, %s96
    %p103 = scmp.eq.s32.totalorder %s23, 1
    %p104 = por %p102, %p103
    %p105 = scmp.ne.s32.totalorder %s96, %s97
    %p106 = scmp.eq.s32.totalorder %s23, 0
    %p107 = por %p105, %p106
    %p108 = scmp.ne.s32.totalorder %s96, %s97
    %p109 = scmp.eq.s32.totalorder %s24, 1
    %p110 = por %p108, %p109
    %p112 = scmp.ne.s32.totalorder %s97, %s111
    %p113 = scmp.eq.s32.totalorder %s24, 0
    %p114 = por %p112, %p113
    %s116 = sadd.s32 %s115, 1
    %p119 = scmp.eq.s32.totalorder %s18, 1
    %p120 = scmp.ne.s32.totalorder %s115, %s117
    %p121 = scmp.eq.s32.totalorder %s18, 0
    %p122 = por %p120, %p121
    %p123 = scmp.ne.s32.totalorder %s115, %s117
    %p124 = scmp.eq.s32.totalorder %s23, 1
    %p125 = por %p123, %p124
    %p126 = scmp.ne.s32.totalorder %s117, %s118
    %p127 = scmp.eq.s32.totalorder %s23, 0
    %p128 = por %p126, %p127
    %p129 = scmp.ne.s32.totalorder %s117, %s118
    %p130 = scmp.eq.s32.totalorder %s24, 1
    %p131 = por %p129, %p130
    %p133 = scmp.ne.s32.totalorder %s118, %s132
    %p134 = scmp.eq.s32.totalorder %s24, 0
    %p135 = por %p133, %p134
    %s137 = sadd.s32 %s136, 1
    %p140 = scmp.eq.s32.totalorder %s18, 1
    %p141 = scmp.ne.s32.totalorder %s136, %s138
    %p142 = scmp.eq.s32.totalorder %s18, 0
    %p143 = por %p141, %p142
    %p144 = scmp.ne.s32.totalorder %s136, %s138
    %p145 = scmp.eq.s32.totalorder %s23, 1
    %p146 = por %p144, %p145
    %p147 = scmp.ne.s32.totalorder %s138, %s139
    %p148 = scmp.eq.s32.totalorder %s23, 0
    %p149 = por %p147, %p148
    %p150 = scmp.ne.s32.totalorder %s138, %s139
    %p151 = scmp.eq.s32.totalorder %s24, 1
    %p152 = por %p150, %p151
    %p154 = scmp.ne.s32.totalorder %s139, %s153
    %p155 = scmp.eq.s32.totalorder %s24, 0
    %p156 = por %p154, %p155
    %s158 = sadd.s32 %s157, 1
    %p161 = scmp.eq.s32.totalorder %s18, 1
    %p162 = scmp.ne.s32.totalorder %s157, %s159
    %p163 = scmp.eq.s32.totalorder %s18, 0
    %p164 = por %p162, %p163
    %p165 = scmp.ne.s32.totalorder %s157, %s159
    %p166 = scmp.eq.s32.totalorder %s23, 1
    %p167 = por %p165, %p166
    %p168 = scmp.ne.s32.totalorder %s159, %s160
    %p169 = scmp.eq.s32.totalorder %s23, 0
    %p170 = por %p168, %p169
    %p171 = scmp.ne.s32.totalorder %s159, %s160
    %p172 = scmp.eq.s32.totalorder %s24, 1
    %p173 = por %p171, %p172
    %p175 = scmp.ne.s32.totalorder %s160, %s174
    %p176 = scmp.eq.s32.totalorder %s24, 0
    %p177 = por %p175, %p176
    %s179 = sadd.s32 %s178, 1
    %p182 = scmp.eq.s32.totalorder %s18, 1
    %p183 = scmp.ne.s32.totalorder %s178, %s180
    %p184 = scmp.eq.s32.totalorder %s18, 0
    %p185 = por %p183, %p184
    %p186 = scmp.ne.s32.totalorder %s178, %s180
    %p187 = scmp.eq.s32.totalorder %s23, 1
    %p188 = por %p186, %p187
    %p189 = scmp.ne.s32.totalorder %s180, %s181
    %p190 = scmp.eq.s32.totalorder %s23, 0
    %p191 = por %p189, %p190
    %p192 = scmp.ne.s32.totalorder %s180, %s181
    %p193 = scmp.eq.s32.totalorder %s24, 1
    %p194 = por %p192, %p193
    %p196 = scmp.ne.s32.totalorder %s181, %s195
    %p197 = scmp.eq.s32.totalorder %s24, 0
    %p198 = por %p196, %p197
    %s200 = sadd.s32 %s199, 1
    %p203 = scmp.eq.s32.totalorder %s18, 1
    %p204 = scmp.ne.s32.totalorder %s199, %s201
    %p205 = scmp.eq.s32.totalorder %s18, 0
    %p206 = por %p204, %p205
    %p207 = scmp.ne.s32.totalorder %s199, %s201
    %p208 = scmp.eq.s32.totalorder %s23, 1
    %p209 = por %p207, %p208
    %p210 = scmp.ne.s32.totalorder %s201, %s202
    %p211 = scmp.eq.s32.totalorder %s23, 0
    %p212 = por %p210, %p211
    %p213 = scmp.ne.s32.totalorder %s201, %s202
    %p214 = scmp.eq.s32.totalorder %s24, 1
    %p215 = por %p213, %p214
    %p217 = scmp.ne.s32.totalorder %s202, %s216
    %p218 = scmp.eq.s32.totalorder %s24, 0
    %p219 = por %p217, %p218
    %s221 = sadd.s32 %s220, 1
    %p224 = scmp.eq.s32.totalorder %s18, 1
    %p225 = scmp.ne.s32.totalorder %s220, %s222
    %p226 = scmp.eq.s32.totalorder %s18, 0
    %p227 = por %p225, %p226
    %p228 = scmp.ne.s32.totalorder %s220, %s222
    %p229 = scmp.eq.s32.totalorder %s23, 1
    %p230 = por %p228, %p229
    %p231 = scmp.ne.s32.totalorder %s222, %s223
    %p232 = scmp.eq.s32.totalorder %s23, 0
    %p233 = por %p231, %p232
    %p234 = scmp.ne.s32.totalorder %s222, %s223
    %p235 = scmp.eq.s32.totalorder %s24, 1
    %p236 = por %p234, %p235
    %p238 = scmp.ne.s32.totalorder %s223, %s237
    %p239 = scmp.eq.s32.totalorder %s24, 0
    %p240 = por %p238, %p239
    %s242 = sadd.s32 %s241, 1
    %p245 = scmp.eq.s32.totalorder %s18, 1
    %p246 = scmp.ne.s32.totalorder %s241, %s243
    %p247 = scmp.eq.s32.totalorder %s18, 0
    %p248 = por %p246, %p247
    %p249 = scmp.ne.s32.totalorder %s241, %s243
    %p250 = scmp.eq.s32.totalorder %s23, 1
    %p251 = por %p249, %p250
    %p252 = scmp.ne.s32.totalorder %s243, %s244
    %p253 = scmp.eq.s32.totalorder %s23, 0
    %p254 = por %p252, %p253
    %p255 = scmp.ne.s32.totalorder %s243, %s244
    %p256 = scmp.eq.s32.totalorder %s24, 1
    %p257 = por %p255, %p256
    %p259 = scmp.ne.s32.totalorder %s244, %s258
    %p260 = scmp.eq.s32.totalorder %s24, 0
    %p261 = por %p259, %p260
    %s263 = sadd.s32 %s262, 1
    %p266 = scmp.eq.s32.totalorder %s18, 1
    %p267 = scmp.ne.s32.totalorder %s262, %s264
    %p268 = scmp.eq.s32.totalorder %s18, 0
    %p269 = por %p267, %p268
    %p270 = scmp.ne.s32.totalorder %s262, %s264
    %p271 = scmp.eq.s32.totalorder %s23, 1
    %p272 = por %p270, %p271
    %p273 = scmp.ne.s32.totalorder %s264, %s265
    %p274 = scmp.eq.s32.totalorder %s23, 0
    %p275 = por %p273, %p274
    %p276 = scmp.ne.s32.totalorder %s264, %s265
    %p277 = scmp.eq.s32.totalorder %s24, 1
    %p278 = por %p276, %p277
    %p280 = scmp.ne.s32.totalorder %s265, %s279
    %p281 = scmp.eq.s32.totalorder %s24, 0
    %p282 = por %p280, %p281
    %s283 = ssub.s32 %s18, %s25
    %p284 = scmp.eq.s32.totalorder %s283, 0
    %s286 = sadd.s32 %s285, 1
    %s287 = scalar_select %p284, %s285, %s286
    %p290 = pneg %p284
    %p291 = scmp.eq.s32.totalorder %s18, 1
    %p292 = por %p290, %p291
    %p293 = scmp.ne.s32.totalorder %s285, %s288
    %p294 = scmp.eq.s32.totalorder %s18, 0
    %p295 = por %p293, %p294
    %p296 = scmp.ne.s32.totalorder %s285, %s288
    %p297 = scmp.eq.s32.totalorder %s23, 1
    %p298 = por %p296, %p297
    %p299 = scmp.ne.s32.totalorder %s288, %s289
    %p300 = scmp.eq.s32.totalorder %s23, 0
    %p301 = por %p299, %p300
    %p302 = scmp.ne.s32.totalorder %s288, %s289
    %p303 = scmp.eq.s32.totalorder %s24, 1
    %p304 = por %p302, %p303
    %p306 = scmp.ne.s32.totalorder %s289, %s305
    %p307 = scmp.eq.s32.totalorder %s24, 0
    %p308 = por %p306, %p307
    %p309 = scmp.le.s32.totalorder 1, %s18
    %p310 = scmp.lt.s32.totalorder %s18, 3
    %p311 = pnand %p309, %p310
    %p312 = pneg %p311
    // Predicated region
    $region9: #{fused_mbconv_forward.1} parent=5 // pred_check
      _
    $region10: #{fused_mbconv_forward.1} parent=5 // pred_check_branch
      %314 = sbr.rel (%p311) target = $region12
    $region11: #{fused_mbconv_forward.1} parent=5 // pred_region
      %s315 = ssub.s32 %s18, 1
      // Predicated region
      $region13: #{fused_mbconv_forward.1} parent=11 // pred_check
        %p316 = pneg %p65
      $region14: #{fused_mbconv_forward.1} parent=11 // pred_check_branch
        %318 = sbr.rel (%p316) target = $region16
      $region15: #{fused_mbconv_forward.1} parent=11 // pred_region
        _
      $region16: #{fused_mbconv_forward.1} parent=11 // pred_fallthru
        _
      // Predicated region
      $region17: #{fused_mbconv_forward.1} parent=11 // pred_check
        %p319 = pneg %p86
      $region18: #{fused_mbconv_forward.1} parent=11 // pred_check_branch
        %321 = sbr.rel (%p319) target = $region20
      $region19: #{fused_mbconv_forward.1} parent=11 // pred_region
        _
      $region20: #{fused_mbconv_forward.1} parent=11 // pred_fallthru
        _
      // Predicated region
      $region21: #{fused_mbconv_forward.1} parent=11 // pred_check
        %p322 = pneg %p107
      $region22: #{fused_mbconv_forward.1} parent=11 // pred_check_branch
        %324 = sbr.rel (%p322) target = $region24
      $region23: #{fused_mbconv_forward.1} parent=11 // pred_region
        _
      $region24: #{fused_mbconv_forward.1} parent=11 // pred_fallthru
        _
      // Predicated region
      $region25: #{fused_mbconv_forward.1} parent=11 // pred_check
        %p325 = pneg %p128
      $region26: #{fused_mbconv_forward.1} parent=11 // pred_check_branch
        %327 = sbr.rel (%p325) target = $region28
      $region27: #{fused_mbconv_forward.1} parent=11 // pred_region
        _
      $region28: #{fused_mbconv_forward.1} parent=11 // pred_fallthru
        _
      // Predicated region
      $region29: #{fused_mbconv_forward.1} parent=11 // pred_check
        %p328 = pneg %p149
      $region30: #{fused_mbconv_forward.1} parent=11 // pred_check_branch
        %330 = sbr.rel (%p328) target = $region32
      $region31: #{fused_mbconv_forward.1} parent=11 // pred_region
        _
      $region32: #{fused_mbconv_forward.1} parent=11 // pred_fallthru
        _
      // Predicated region
      $region33: #{fused_mbconv_forward.1} parent=11 // pred_check
        %p331 = pneg %p170
      $region34: #{fused_mbconv_forward.1} parent=11 // pred_check_branch
        %333 = sbr.rel (%p331) target = $region36
      $region35: #{fused_mbconv_forward.1} parent=11 // pred_region
        _
      $region36: #{fused_mbconv_forward.1} parent=11 // pred_fallthru
        _
      // Predicated region
      $region37: #{fused_mbconv_forward.1} parent=11 // pred_check
        %p334 = pneg %p191
      $region38: #{fused_mbconv_forward.1} parent=11 // pred_check_branch
        %336 = sbr.rel (%p334) target = $region40
      $region39: #{fused_mbconv_forward.1} parent=11 // pred_region
        _
      $region40: #{fused_mbconv_forward.1} parent=11 // pred_fallthru
        _
      // Predicated region
      $region41: #{fused_mbconv_forward.1} parent=11 // pred_check
        %p337 = pneg %p212
      $region42: #{fused_mbconv_forward.1} parent=11 // pred_check_branch
        %339 = sbr.rel (%p337) target = $region44
      $region43: #{fused_mbconv_forward.1} parent=11 // pred_region
        _
      $region44: #{fused_mbconv_forward.1} parent=11 // pred_fallthru
        _
      // Predicated region
      $region45: #{fused_mbconv_forward.1} parent=11 // pred_check
        %p340 = pneg %p233
      $region46: #{fused_mbconv_forward.1} parent=11 // pred_check_branch
        %342 = sbr.rel (%p340) target = $region48
      $region47: #{fused_mbconv_forward.1} parent=11 // pred_region
        _
      $region48: #{fused_mbconv_forward.1} parent=11 // pred_fallthru
        _
      // Predicated region
      $region49: #{fused_mbconv_forward.1} parent=11 // pred_check
        %p343 = pneg %p254
      $region50: #{fused_mbconv_forward.1} parent=11 // pred_check_branch
        %345 = sbr.rel (%p343) target = $region52
      $region51: #{fused_mbconv_forward.1} parent=11 // pred_region
        _
      $region52: #{fused_mbconv_forward.1} parent=11 // pred_fallthru
        _
      // Predicated region
      $region53: #{fused_mbconv_forward.1} parent=11 // pred_check
        %p346 = pneg %p275
      $region54: #{fused_mbconv_forward.1} parent=11 // pred_check_branch
        %348 = sbr.rel (%p346) target = $region56
      $region55: #{fused_mbconv_forward.1} parent=11 // pred_region
        _
      $region56: #{fused_mbconv_forward.1} parent=11 // pred_fallthru
        _
    $region12: #{fused_mbconv_forward.1} parent=5 // pred_fallthru
      _
    %p349 = scmp.lt.s32.totalorder %s18, 2
    // Predicated region
    $region57: #{fused_mbconv_forward.1} parent=5 // pred_check
      %p350 = pneg %p349
    $region58: #{fused_mbconv_forward.1} parent=5 // pred_check_branch
      %352 = sbr.rel (%p350) target = $region60
    $region59: #{fused_mbconv_forward.1} parent=5 // pred_region
      // Predicated region
      $region61: #{fused_mbconv_forward.1} parent=59 // pred_check
        %p353 = pneg %p38
      $region62: #{fused_mbconv_forward.1} parent=59 // pred_check_branch
        %355 = sbr.rel (%p353) target = $region64
      $region63: #{fused_mbconv_forward.1} parent=59 // pred_region
        %p356 = scmp.lt.s32.totalorder %s18, 1
        %s357 = scalar_select %p356, %s18, 1
        %s358 = smul.addr %s357, 36
        %s359 = smul.addr %s358, 8
        %s360 = scalar_lea.vmem %s0, %s359
      $region64: #{fused_mbconv_forward.1} parent=59 // pred_fallthru
        _
    $region60: #{fused_mbconv_forward.1} parent=5 // pred_fallthru
      _
    %p361 = scmp.le.s32.totalorder 1, %s18
    %p362 = scmp.lt.s32.totalorder %s18, 3
    %p363 = pnand %p361, %p362
    %p364 = pneg %p363
    // Predicated region
    $region65: #{fused_mbconv_forward.1} parent=5 // pred_check
      _
    $region66: #{fused_mbconv_forward.1} parent=5 // pred_check_branch
      %366 = sbr.rel (%p363) target = $region68
    $region67: #{fused_mbconv_forward.1} parent=5 // pred_region
      %s367 = ssub.s32 %s18, 1
      %p368 = scmp.lt.s32.totalorder %s23, 1
      %s369 = scalar_select %p368, %s23, 1
      %s370 = smul.addr %s369, 36
      %s371 = smul.addr %s370, 8
      %s372 = scalar_lea.vmem %s0, %s371
      %p373 = pneg %p44
      %p374 = pneg %p41
      %p375 = pneg %p65
      %p376 = pneg %p62
      %p377 = pneg %p86
      %p378 = pneg %p83
      %p379 = pneg %p107
      %p380 = pneg %p104
      %p381 = pneg %p128
      %p382 = pneg %p125
      %p383 = pneg %p149
      %p384 = pneg %p146
      %p385 = pneg %p170
      %p386 = pneg %p167
      %p387 = pneg %p191
      %p388 = pneg %p188
      %p389 = pneg %p212
      %p390 = pneg %p209
      %p391 = pneg %p233
      %p392 = pneg %p230
      %p393 = pneg %p254
      %p394 = pneg %p251
      %p395 = pneg %p275
      %p396 = pneg %p272
      %p397 = pneg %p301
      %p398 = pneg %p298
      %p399 = scmp.lt.s32.totalorder %s23, 1
      %s400 = scalar_select %p399, %s23, 1
      %s401 = smul.addr %s400, 32
      %s402 = smul.addr %s401, 8
      %s403 = scalar_lea.vmem %s12, %s402
      %p404 = scmp.lt.s32.totalorder %s23, 1
      %s405 = scalar_select %p404, %s23, 1
      %s406 = smul.addr %s405, 36
      %s407 = smul.addr %s406, 8
      %s408 = scalar_lea.vmem %s0, %s407
      %p409 = scmp.lt.s32.totalorder %s23, 1
      %s410 = scalar_select %p409, %s23, 1
      %s411 = smul.addr %s410, 32
      %s412 = smul.addr %s411, 8
      %s413 = scalar_lea.vmem %s12, %s412
      %v414 = vld [vmem:[%s408] sm:$0xff]
      %v415 = vld [vmem:[%s408 + $0x8] sm:$0xff]
      %v416 = vld [vmem:[%s408 + $0x10] sm:$0xff]
      %v417 = vld [vmem:[%s408 + $0x18] sm:$0xff]
      %v418 = vld [vmem:[%s408 + $0x20] sm:$0xff]
      %v419 = vld [vmem:[%s408 + $0x28] sm:$0xff]
      %v420 = vld [vmem:[%s408 + $0x30] sm:$0xff]
      %v421 = vld [vmem:[%s408 + $0x38] sm:$0xff]
      %v422 = vld [vmem:[%s408 + $0x40] sm:$0xff]
      %v423 = vld [vmem:[%s408 + $0x48] sm:$0xff]
      %v424 = vld [vmem:[%s408 + $0x50] sm:$0xff]
      %v425 = vld [vmem:[%s408 + $0x58] sm:$0xff]
      %v426 = vld [vmem:[%s408 + $0x60] sm:$0xff]
      %v427 = vld [vmem:[%s408 + $0x68] sm:$0xff]
      %v428 = vld [vmem:[%s408 + $0x70] sm:$0xff]
      %v429 = vld [vmem:[%s408 + $0x78] sm:$0xff]
      %v430 = vld [vmem:[%s408 + $0x80] sm:$0xff]
      %v431 = vld [vmem:[%s408 + $0x88] sm:$0xff]
      %v432 = vld [vmem:[%s408 + $0x90] sm:$0xff]
      %v433 = vld [vmem:[%s408 + $0x98] sm:$0xff]
      %v434 = vld [vmem:[%s408 + $0xa0] sm:$0xff]
      %v435 = vld [vmem:[%s408 + $0xa8] sm:$0xff]
      %v436 = vld [vmem:[%s408 + $0xb0] sm:$0xff]
      %v437 = vld [vmem:[%s408 + $0xb8] sm:$0xff]
      %v438 = vld [vmem:[%s408 + $0xc0] sm:$0xff]
      %v439 = vld [vmem:[%s408 + $0xc8] sm:$0xff]
      %v440 = vld [vmem:[%s408 + $0xd0] sm:$0xff]
      %v441 = vld [vmem:[%s408 + $0xd8] sm:$0xff]
      %v442 = vld [vmem:[%s408 + $0xe0] sm:$0xff]
      %v443 = vld [vmem:[%s408 + $0xe8] sm:$0xff]
      %v444 = vld [vmem:[%s408 + $0xf0] sm:$0xff]
      %v445 = vld [vmem:[%s408 + $0xf8] sm:$0xff]
      %s446 = scalar_lea.vmem %s408, 16
      %v447 = vld [vmem:[%s446] sm:$0xff]
      %v448 = vld [vmem:[%s446 + $0x8] sm:$0xff]
      %v449 = vld [vmem:[%s446 + $0x10] sm:$0xff]
      %v450 = vld [vmem:[%s446 + $0x18] sm:$0xff]
      %v451 = vld [vmem:[%s446 + $0x20] sm:$0xff]
      %v452 = vld [vmem:[%s446 + $0x28] sm:$0xff]
      %v453 = vld [vmem:[%s446 + $0x30] sm:$0xff]
      %v454 = vld [vmem:[%s446 + $0x38] sm:$0xff]
      %v455 = vld [vmem:[%s446 + $0x40] sm:$0xff]
      %v456 = vld [vmem:[%s446 + $0x48] sm:$0xff]
      %v457 = vld [vmem:[%s446 + $0x50] sm:$0xff]
      %v458 = vld [vmem:[%s446 + $0x58] sm:$0xff]
      %v459 = vld [vmem:[%s446 + $0x60] sm:$0xff]
      %v460 = vld [vmem:[%s446 + $0x68] sm:$0xff]
      %v461 = vld [vmem:[%s446 + $0x70] sm:$0xff]
      %v462 = vld [vmem:[%s446 + $0x78] sm:$0xff]
      %v463 = vld [vmem:[%s446 + $0x80] sm:$0xff]
      %v464 = vld [vmem:[%s446 + $0x88] sm:$0xff]
      %v465 = vld [vmem:[%s446 + $0x90] sm:$0xff]
      %v466 = vld [vmem:[%s446 + $0x98] sm:$0xff]
      %v467 = vld [vmem:[%s446 + $0xa0] sm:$0xff]
      %v468 = vld [vmem:[%s446 + $0xa8] sm:$0xff]
      %v469 = vld [vmem:[%s446 + $0xb0] sm:$0xff]
      %v470 = vld [vmem:[%s446 + $0xb8] sm:$0xff]
      %v471 = vld [vmem:[%s446 + $0xc0] sm:$0xff]
      %v472 = vld [vmem:[%s446 + $0xc8] sm:$0xff]
      %v473 = vld [vmem:[%s446 + $0xd0] sm:$0xff]
      %v474 = vld [vmem:[%s446 + $0xd8] sm:$0xff]
      %v475 = vld [vmem:[%s446 + $0xe0] sm:$0xff]
      %v476 = vld [vmem:[%s446 + $0xe8] sm:$0xff]
      %v477 = vld [vmem:[%s446 + $0xf0] sm:$0xff]
      %v478 = vld [vmem:[%s446 + $0xf8] sm:$0xff]
      %s479 = scalar_lea.vmem %s408, 32
      %v480 = vld [vmem:[%s479] sm:$0xff]
      %v481 = vld [vmem:[%s479 + $0x8] sm:$0xff]
      %v482 = vld [vmem:[%s479 + $0x10] sm:$0xff]
      %v483 = vld [vmem:[%s479 + $0x18] sm:$0xff]
      %v484 = vld [vmem:[%s479 + $0x20] sm:$0xff]
      %v485 = vld [vmem:[%s479 + $0x28] sm:$0xff]
      %v486 = vld [vmem:[%s479 + $0x30] sm:$0xff]
      %v487 = vld [vmem:[%s479 + $0x38] sm:$0xff]
      %v488 = vld [vmem:[%s479 + $0x40] sm:$0xff]
      %v489 = vld [vmem:[%s479 + $0x48] sm:$0xff]
      %v490 = vld [vmem:[%s479 + $0x50] sm:$0xff]
      %v491 = vld [vmem:[%s479 + $0x58] sm:$0xff]
      %v492 = vld [vmem:[%s479 + $0x60] sm:$0xff]
      %v493 = vld [vmem:[%s479 + $0x68] sm:$0xff]
      %v494 = vld [vmem:[%s479 + $0x70] sm:$0xff]
      %v495 = vld [vmem:[%s479 + $0x78] sm:$0xff]
      %v496 = vld [vmem:[%s479 + $0x80] sm:$0xff]
      %v497 = vld [vmem:[%s479 + $0x88] sm:$0xff]
      %v498 = vld [vmem:[%s479 + $0x90] sm:$0xff]
      %v499 = vld [vmem:[%s479 + $0x98] sm:$0xff]
      %v500 = vld [vmem:[%s479 + $0xa0] sm:$0xff]
      %v501 = vld [vmem:[%s479 + $0xa8] sm:$0xff]
      %v502 = vld [vmem:[%s479 + $0xb0] sm:$0xff]
      %v503 = vld [vmem:[%s479 + $0xb8] sm:$0xff]
      %v504 = vld [vmem:[%s479 + $0xc0] sm:$0xff]
      %v505 = vld [vmem:[%s479 + $0xc8] sm:$0xff]
      %v506 = vld [vmem:[%s479 + $0xd0] sm:$0xff]
      %v507 = vld [vmem:[%s479 + $0xd8] sm:$0xff]
      %v508 = vld [vmem:[%s479 + $0xe0] sm:$0xff]
      %v509 = vld [vmem:[%s479 + $0xe8] sm:$0xff]
      %v510 = vld [vmem:[%s479 + $0xf0] sm:$0xff]
      %v511 = vld [vmem:[%s479 + $0xf8] sm:$0xff]
      %v512 = vld [vmem:[%s1] sm:$0xff]
      %v513 = vld [vmem:[%s1 + $0x8] sm:$0xf]
      %s514 = scalar_lea.vmem %s1, 16
      %v515 = vld [vmem:[%s514] sm:$0xff]
      %v516 = vld [vmem:[%s514 + $0x8] sm:$0xf]
      %vm517 = vcmask 97280
      %v519 = vsel %vm517, %v447, 0
      %v522 = vsel %vm517, %v448, 0
      %v525 = vsel %vm517, %v449, 0
      %v528 = vsel %vm517, %v450, 0
      %v531 = vsel %vm517, %v451, 0
      %v534 = vsel %vm517, %v452, 0
      %v537 = vsel %vm517, %v453, 0
      %v540 = vsel %vm517, %v454, 0
      %v543 = vsel %vm517, %v455, 0
      %v546 = vsel %vm517, %v456, 0
      %v549 = vsel %vm517, %v457, 0
      %v552 = vsel %vm517, %v458, 0
      %v555 = vsel %vm517, %v459, 0
      %v558 = vsel %vm517, %v460, 0
      %v561 = vsel %vm517, %v461, 0
      %v564 = vsel %vm517, %v462, 0
      %v567 = vsel %vm517, %v463, 0
      %v570 = vsel %vm517, %v464, 0
      %v573 = vsel %vm517, %v465, 0
      %v576 = vsel %vm517, %v466, 0
      %v579 = vsel %vm517, %v467, 0
      %v582 = vsel %vm517, %v468, 0
      %v585 = vsel %vm517, %v469, 0
      %v588 = vsel %vm517, %v470, 0
      %v591 = vsel %vm517, %v471, 0
      %v594 = vsel %vm517, %v472, 0
      %v597 = vsel %vm517, %v473, 0
      %v600 = vsel %vm517, %v474, 0
      %v603 = vsel %vm517, %v475, 0
      %v606 = vsel %vm517, %v476, 0
      %v609 = vsel %vm517, %v477, 0
      %v612 = vsel %vm517, %v478, 0
      %vm614 = vcmask 1043456
      %v616 = vsel %vm614, %v516, 0
      %618 = vmatpush.msra.mxu0 0.0
      %619 = vmatpush.msra.mxu0 0.0
      %620 = vmatpush.msra.mxu0 0.0
      %621 = vmatpush.msra.mxu0 0.0
      %622 = vmatpush.msra.mxu0 0.0
      %623 = vmatpush.msra.mxu0 0.0
      %624 = vmatpush.msra.mxu0 0.0
      %625 = vmatpush.msra.mxu0 0.0
      %626 = vmatpush.msra.mxu0 0.0
      %627 = vmatpush.msra.mxu0 0.0
      %628 = vmatpush.msra.mxu0 0.0
      %629 = vmatpush.msra.mxu0 0.0
      %630 = vmatpush.msra.mxu0 0.0
      %631 = vmatpush.msra.mxu0 0.0
      %632 = vmatpush.msra.mxu0 %v616
      %633 = vmatpush.msra.mxu0 %v515
      %634 = vmatmul.f32.gmra.mxu0 %v519
      %v635 = vpop.f32.mrf.mxu0
      %v636 = vadd.f32 0.0, %v635
      %637 = vmatmul.f32.gmra.mxu0 %v522
      %v638 = vpop.f32.mrf.mxu0
      %v639 = vadd.f32 0.0, %v638
      %640 = vmatmul.f32.gmra.mxu0 %v525
      %v641 = vpop.f32.mrf.mxu0
      %v642 = vadd.f32 0.0, %v641
      %643 = vmatmul.f32.gmra.mxu0 %v528
      %v644 = vpop.f32.mrf.mxu0
      %v645 = vadd.f32 0.0, %v644
      %646 = vmatmul.f32.gmra.mxu0 %v531
      %v647 = vpop.f32.mrf.mxu0
      %v648 = vadd.f32 0.0, %v647
      %649 = vmatmul.f32.gmra.mxu0 %v534
      %v650 = vpop.f32.mrf.mxu0
      %v651 = vadd.f32 0.0, %v650
      %652 = vmatmul.f32.gmra.mxu0 %v537
      %v653 = vpop.f32.mrf.mxu0
      %v654 = vadd.f32 0.0, %v653
      %655 = vmatmul.f32.gmra.mxu0 %v540
      %v656 = vpop.f32.mrf.mxu0
      %v657 = vadd.f32 0.0, %v656
      %658 = vmatmul.f32.gmra.mxu0 %v543
      %v659 = vpop.f32.mrf.mxu0
      %v660 = vadd.f32 0.0, %v659
      %661 = vmatmul.f32.gmra.mxu0 %v546
      %v662 = vpop.f32.mrf.mxu0
      %v663 = vadd.f32 0.0, %v662
      %664 = vmatmul.f32.gmra.mxu0 %v549
      %v665 = vpop.f32.mrf.mxu0
      %v666 = vadd.f32 0.0, %v665
      %667 = vmatmul.f32.gmra.mxu0 %v552
      %v668 = vpop.f32.mrf.mxu0
      %v669 = vadd.f32 0.0, %v668
      %670 = vmatmul.f32.gmra.mxu0 %v555
      %v671 = vpop.f32.mrf.mxu0
      %v672 = vadd.f32 0.0, %v671
      %673 = vmatmul.f32.gmra.mxu0 %v558
      %v674 = vpop.f32.mrf.mxu0
      %v675 = vadd.f32 0.0, %v674
      %676 = vmatmul.f32.gmra.mxu0 %v561
      %v677 = vpop.f32.mrf.mxu0
      %v678 = vadd.f32 0.0, %v677
      %679 = vmatmul.f32.gmra.mxu0 %v564
      %v680 = vpop.f32.mrf.mxu0
      %v681 = vadd.f32 0.0, %v680
      %682 = vmatmul.f32.gmra.mxu0 %v567
      %v683 = vpop.f32.mrf.mxu0
      %v684 = vadd.f32 0.0, %v683
      %685 = vmatmul.f32.gmra.mxu0 %v570
      %v686 = vpop.f32.mrf.mxu0
      %v687 = vadd.f32 0.0, %v686
      %688 = vmatmul.f32.gmra.mxu0 %v573
      %v689 = vpop.f32.mrf.mxu0
      %v690 = vadd.f32 0.0, %v689
      %691 = vmatmul.f32.gmra.mxu0 %v576
      %v692 = vpop.f32.mrf.mxu0
      %v693 = vadd.f32 0.0, %v692
      %694 = vmatmul.f32.gmra.mxu0 %v579
      %v695 = vpop.f32.mrf.mxu0
      %v696 = vadd.f32 0.0, %v695
      %697 = vmatmul.f32.gmra.mxu0 %v582
      %v698 = vpop.f32.mrf.mxu0
      %v699 = vadd.f32 0.0, %v698
      %700 = vmatmul.f32.gmra.mxu0 %v585
      %v701 = vpop.f32.mrf.mxu0
      %v702 = vadd.f32 0.0, %v701
      %703 = vmatmul.f32.gmra.mxu0 %v588
      %v704 = vpop.f32.mrf.mxu0
      %v705 = vadd.f32 0.0, %v704
      %706 = vmatmul.f32.gmra.mxu0 %v591
      %v707 = vpop.f32.mrf.mxu0
      %v708 = vadd.f32 0.0, %v707
      %709 = vmatmul.f32.gmra.mxu0 %v594
      %v710 = vpop.f32.mrf.mxu0
      %v711 = vadd.f32 0.0, %v710
      %712 = vmatmul.f32.gmra.mxu0 %v597
      %v713 = vpop.f32.mrf.mxu0
      %v714 = vadd.f32 0.0, %v713
      %715 = vmatmul.f32.gmra.mxu0 %v600
      %v716 = vpop.f32.mrf.mxu0
      %v717 = vadd.f32 0.0, %v716
      %718 = vmatmul.f32.gmra.mxu0 %v603
      %v719 = vpop.f32.mrf.mxu0
      %v720 = vadd.f32 0.0, %v719
      %721 = vmatmul.f32.gmra.mxu0 %v606
      %v722 = vpop.f32.mrf.mxu0
      %v723 = vadd.f32 0.0, %v722
      %724 = vmatmul.f32.gmra.mxu0 %v609
      %v725 = vpop.f32.mrf.mxu0
      %v726 = vadd.f32 0.0, %v725
      %727 = vmatmul.f32.gmra.mxu0 %v612
      %v728 = vpop.f32.mrf.mxu0
      %v729 = vadd.f32 0.0, %v728
      %730 = vdwg.mxu0
      %v732 = vsel %vm517, %v414, 0
      %v735 = vsel %vm517, %v415, 0
      %v738 = vsel %vm517, %v416, 0
      %v741 = vsel %vm517, %v417, 0
      %v744 = vsel %vm517, %v418, 0
      %v747 = vsel %vm517, %v419, 0
      %v750 = vsel %vm517, %v420, 0
      %v753 = vsel %vm517, %v421, 0
      %v756 = vsel %vm517, %v422, 0
      %v759 = vsel %vm517, %v423, 0
      %v762 = vsel %vm517, %v424, 0
      %v765 = vsel %vm517, %v425, 0
      %v768 = vsel %vm517, %v426, 0
      %v771 = vsel %vm517, %v427, 0
      %v774 = vsel %vm517, %v428, 0
      %v777 = vsel %vm517, %v429, 0
      %v780 = vsel %vm517, %v430, 0
      %v783 = vsel %vm517, %v431, 0
      %v786 = vsel %vm517, %v432, 0
      %v789 = vsel %vm517, %v433, 0
      %v792 = vsel %vm517, %v434, 0
      %v795 = vsel %vm517, %v435, 0
      %v798 = vsel %vm517, %v436, 0
      %v801 = vsel %vm517, %v437, 0
      %v804 = vsel %vm517, %v438, 0
      %v807 = vsel %vm517, %v439, 0
      %v810 = vsel %vm517, %v440, 0
      %v813 = vsel %vm517, %v441, 0
      %v816 = vsel %vm517, %v442, 0
      %v819 = vsel %vm517, %v443, 0
      %v822 = vsel %vm517, %v444, 0
      %v825 = vsel %vm517, %v445, 0
      %v828 = vsel %vm614, %v513, 0
      %830 = vmatpush.msra.mxu0 0.0
      %831 = vmatpush.msra.mxu0 0.0
      %832 = vmatpush.msra.mxu0 0.0
      %833 = vmatpush.msra.mxu0 0.0
      %834 = vmatpush.msra.mxu0 0.0
      %835 = vmatpush.msra.mxu0 0.0
      %836 = vmatpush.msra.mxu0 0.0
      %837 = vmatpush.msra.mxu0 0.0
      %838 = vmatpush.msra.mxu0 0.0
      %839 = vmatpush.msra.mxu0 0.0
      %840 = vmatpush.msra.mxu0 0.0
      %841 = vmatpush.msra.mxu0 0.0
      %842 = vmatpush.msra.mxu0 0.0
      %843 = vmatpush.msra.mxu0 0.0
      %844 = vmatpush.msra.mxu0 %v828
      %845 = vmatpush.msra.mxu0 %v512
      %846 = vmatmul.f32.gmra.mxu0 %v732
      %v847 = vpop.f32.mrf.mxu0
      %v848 = vadd.f32 %v636, %v847
      %849 = vmatmul.f32.gmra.mxu0 %v735
      %v850 = vpop.f32.mrf.mxu0
      %v851 = vadd.f32 %v639, %v850
      %852 = vmatmul.f32.gmra.mxu0 %v738
      %v853 = vpop.f32.mrf.mxu0
      %v854 = vadd.f32 %v642, %v853
      %855 = vmatmul.f32.gmra.mxu0 %v741
      %v856 = vpop.f32.mrf.mxu0
      %v857 = vadd.f32 %v645, %v856
      %858 = vmatmul.f32.gmra.mxu0 %v744
      %v859 = vpop.f32.mrf.mxu0
      %v860 = vadd.f32 %v648, %v859
      %861 = vmatmul.f32.gmra.mxu0 %v747
      %v862 = vpop.f32.mrf.mxu0
      %v863 = vadd.f32 %v651, %v862
      %864 = vmatmul.f32.gmra.mxu0 %v750
      %v865 = vpop.f32.mrf.mxu0
      %v866 = vadd.f32 %v654, %v865
      %867 = vmatmul.f32.gmra.mxu0 %v753
      %v868 = vpop.f32.mrf.mxu0
      %v869 = vadd.f32 %v657, %v868
      %870 = vmatmul.f32.gmra.mxu0 %v756
      %v871 = vpop.f32.mrf.mxu0
      %v872 = vadd.f32 %v660, %v871
      %873 = vmatmul.f32.gmra.mxu0 %v759
      %v874 = vpop.f32.mrf.mxu0
      %v875 = vadd.f32 %v663, %v874
      %876 = vmatmul.f32.gmra.mxu0 %v762
      %v877 = vpop.f32.mrf.mxu0
      %v878 = vadd.f32 %v666, %v877
      %879 = vmatmul.f32.gmra.mxu0 %v765
      %v880 = vpop.f32.mrf.mxu0
      %v881 = vadd.f32 %v669, %v880
      %882 = vmatmul.f32.gmra.mxu0 %v768
      %v883 = vpop.f32.mrf.mxu0
      %v884 = vadd.f32 %v672, %v883
      %885 = vmatmul.f32.gmra.mxu0 %v771
      %v886 = vpop.f32.mrf.mxu0
      %v887 = vadd.f32 %v675, %v886
      %888 = vmatmul.f32.gmra.mxu0 %v774
      %v889 = vpop.f32.mrf.mxu0
      %v890 = vadd.f32 %v678, %v889
      %891 = vmatmul.f32.gmra.mxu0 %v777
      %v892 = vpop.f32.mrf.mxu0
      %v893 = vadd.f32 %v681, %v892
      %894 = vmatmul.f32.gmra.mxu0 %v780
      %v895 = vpop.f32.mrf.mxu0
      %v896 = vadd.f32 %v684, %v895
      %897 = vmatmul.f32.gmra.mxu0 %v783
      %v898 = vpop.f32.mrf.mxu0
      %v899 = vadd.f32 %v687, %v898
      %900 = vmatmul.f32.gmra.mxu0 %v786
      %v901 = vpop.f32.mrf.mxu0
      %v902 = vadd.f32 %v690, %v901
      %903 = vmatmul.f32.gmra.mxu0 %v789
      %v904 = vpop.f32.mrf.mxu0
      %v905 = vadd.f32 %v693, %v904
      %906 = vmatmul.f32.gmra.mxu0 %v792
      %v907 = vpop.f32.mrf.mxu0
      %v908 = vadd.f32 %v696, %v907
      %909 = vmatmul.f32.gmra.mxu0 %v795
      %v910 = vpop.f32.mrf.mxu0
      %v911 = vadd.f32 %v699, %v910
      %912 = vmatmul.f32.gmra.mxu0 %v798
      %v913 = vpop.f32.mrf.mxu0
      %v914 = vadd.f32 %v702, %v913
      %915 = vmatmul.f32.gmra.mxu0 %v801
      %v916 = vpop.f32.mrf.mxu0
      %v917 = vadd.f32 %v705, %v916
      %918 = vmatmul.f32.gmra.mxu0 %v804
      %v919 = vpop.f32.mrf.mxu0
      %v920 = vadd.f32 %v708, %v919
      %921 = vmatmul.f32.gmra.mxu0 %v807
      %v922 = vpop.f32.mrf.mxu0
      %v923 = vadd.f32 %v711, %v922
      %924 = vmatmul.f32.gmra.mxu0 %v810
      %v925 = vpop.f32.mrf.mxu0
      %v926 = vadd.f32 %v714, %v925
      %927 = vmatmul.f32.gmra.mxu0 %v813
      %v928 = vpop.f32.mrf.mxu0
      %v929 = vadd.f32 %v717, %v928
      %930 = vmatmul.f32.gmra.mxu0 %v816
      %v931 = vpop.f32.mrf.mxu0
      %v932 = vadd.f32 %v720, %v931
      %933 = vmatmul.f32.gmra.mxu0 %v819
      %v934 = vpop.f32.mrf.mxu0
      %v935 = vadd.f32 %v723, %v934
      %936 = vmatmul.f32.gmra.mxu0 %v822
      %v937 = vpop.f32.mrf.mxu0
      %v938 = vadd.f32 %v726, %v937
      %939 = vmatmul.f32.gmra.mxu0 %v825
      %v940 = vpop.f32.mrf.mxu0
      %v941 = vadd.f32 %v729, %v940
      %942 = vdwg.mxu0
      %s943 = scalar_lea.vmem %s1, 32
      %v944 = vld [vmem:[%s943] sm:$0xff]
      %v945 = vld [vmem:[%s943 + $0x8] sm:$0xf]
      %v947 = vsel %vm517, %v480, 0
      %v950 = vsel %vm517, %v481, 0
      %v953 = vsel %vm517, %v482, 0
      %v956 = vsel %vm517, %v483, 0
      %v959 = vsel %vm517, %v484, 0
      %v962 = vsel %vm517, %v485, 0
      %v965 = vsel %vm517, %v486, 0
      %v968 = vsel %vm517, %v487, 0
      %v971 = vsel %vm517, %v488, 0
      %v974 = vsel %vm517, %v489, 0
      %v977 = vsel %vm517, %v490, 0
      %v980 = vsel %vm517, %v491, 0
      %v983 = vsel %vm517, %v492, 0
      %v986 = vsel %vm517, %v493, 0
      %v989 = vsel %vm517, %v494, 0
      %v992 = vsel %vm517, %v495, 0
      %v995 = vsel %vm517, %v496, 0
      %v998 = vsel %vm517, %v497, 0
      %v1001 = vsel %vm517, %v498, 0
      %v1004 = vsel %vm517, %v499, 0
      %v1007 = vsel %vm517, %v500, 0
      %v1010 = vsel %vm517, %v501, 0
      %v1013 = vsel %vm517, %v502, 0
      %v1016 = vsel %vm517, %v503, 0
      %v1019 = vsel %vm517, %v504, 0
      %v1022 = vsel %vm517, %v505, 0
      %v1025 = vsel %vm517, %v506, 0
      %v1028 = vsel %vm517, %v507, 0
      %v1031 = vsel %vm517, %v508, 0
      %v1034 = vsel %vm517, %v509, 0
      %v1037 = vsel %vm517, %v510, 0
      %v1040 = vsel %vm517, %v511, 0
      %v1043 = vsel %vm614, %v945, 0
      %1045 = vmatpush.msra.mxu0 0.0
      %1046 = vmatpush.msra.mxu0 0.0
      %1047 = vmatpush.msra.mxu0 0.0
      %1048 = vmatpush.msra.mxu0 0.0
      %1049 = vmatpush.msra.mxu0 0.0
      %1050 = vmatpush.msra.mxu0 0.0
      %1051 = vmatpush.msra.mxu0 0.0
      %1052 = vmatpush.msra.mxu0 0.0
      %1053 = vmatpush.msra.mxu0 0.0
      %1054 = vmatpush.msra.mxu0 0.0
      %1055 = vmatpush.msra.mxu0 0.0
      %1056 = vmatpush.msra.mxu0 0.0
      %1057 = vmatpush.msra.mxu0 0.0
      %1058 = vmatpush.msra.mxu0 0.0
      %1059 = vmatpush.msra.mxu0 %v1043
      %1060 = vmatpush.msra.mxu0 %v944
      %1061 = vmatmul.f32.gmra.mxu0 %v947
      %v1062 = vpop.f32.mrf.mxu0
      %v1063 = vadd.f32 0.0, %v1062
      %1064 = vmatmul.f32.gmra.mxu0 %v950
      %v1065 = vpop.f32.mrf.mxu0
      %v1066 = vadd.f32 0.0, %v1065
      %1067 = vmatmul.f32.gmra.mxu0 %v953
      %v1068 = vpop.f32.mrf.mxu0
      %v1069 = vadd.f32 0.0, %v1068
      %1070 = vmatmul.f32.gmra.mxu0 %v956
      %v1071 = vpop.f32.mrf.mxu0
      %v1072 = vadd.f32 0.0, %v1071
      %1073 = vmatmul.f32.gmra.mxu0 %v959
      %v1074 = vpop.f32.mrf.mxu0
      %v1075 = vadd.f32 0.0, %v1074
      %1076 = vmatmul.f32.gmra.mxu0 %v962
      %v1077 = vpop.f32.mrf.mxu0
      %v1078 = vadd.f32 0.0, %v1077
      %1079 = vmatmul.f32.gmra.mxu0 %v965
      %v1080 = vpop.f32.mrf.mxu0
      %v1081 = vadd.f32 0.0, %v1080
      %1082 = vmatmul.f32.gmra.mxu0 %v968
      %v1083 = vpop.f32.mrf.mxu0
      %v1084 = vadd.f32 0.0, %v1083
      %1085 = vmatmul.f32.gmra.mxu0 %v971
      %v1086 = vpop.f32.mrf.mxu0
      %v1087 = vadd.f32 0.0, %v1086
      %1088 = vmatmul.f32.gmra.mxu0 %v974
      %v1089 = vpop.f32.mrf.mxu0
      %v1090 = vadd.f32 0.0, %v1089
      %1091 = vmatmul.f32.gmra.mxu0 %v977
      %v1092 = vpop.f32.mrf.mxu0
      %v1093 = vadd.f32 0.0, %v1092
      %1094 = vmatmul.f32.gmra.mxu0 %v980
      %v1095 = vpop.f32.mrf.mxu0
      %v1096 = vadd.f32 0.0, %v1095
      %1097 = vmatmul.f32.gmra.mxu0 %v983
      %v1098 = vpop.f32.mrf.mxu0
      %v1099 = vadd.f32 0.0, %v1098
      %1100 = vmatmul.f32.gmra.mxu0 %v986
      %v1101 = vpop.f32.mrf.mxu0
      %v1102 = vadd.f32 0.0, %v1101
      %1103 = vmatmul.f32.gmra.mxu0 %v989
      %v1104 = vpop.f32.mrf.mxu0
      %v1105 = vadd.f32 0.0, %v1104
      %1106 = vmatmul.f32.gmra.mxu0 %v992
      %v1107 = vpop.f32.mrf.mxu0
      %v1108 = vadd.f32 0.0, %v1107
      %1109 = vmatmul.f32.gmra.mxu0 %v995
      %v1110 = vpop.f32.mrf.mxu0
      %v1111 = vadd.f32 0.0, %v1110
      %1112 = vmatmul.f32.gmra.mxu0 %v998
      %v1113 = vpop.f32.mrf.mxu0
      %v1114 = vadd.f32 0.0, %v1113
      %1115 = vmatmul.f32.gmra.mxu0 %v1001
      %v1116 = vpop.f32.mrf.mxu0
      %v1117 = vadd.f32 0.0, %v1116
      %1118 = vmatmul.f32.gmra.mxu0 %v1004
      %v1119 = vpop.f32.mrf.mxu0
      %v1120 = vadd.f32 0.0, %v1119
      %1121 = vmatmul.f32.gmra.mxu0 %v1007
      %v1122 = vpop.f32.mrf.mxu0
      %v1123 = vadd.f32 0.0, %v1122
      %1124 = vmatmul.f32.gmra.mxu0 %v1010
      %v1125 = vpop.f32.mrf.mxu0
      %v1126 = vadd.f32 0.0, %v1125
      %1127 = vmatmul.f32.gmra.mxu0 %v1013
      %v1128 = vpop.f32.mrf.mxu0
      %v1129 = vadd.f32 0.0, %v1128
      %1130 = vmatmul.f32.gmra.mxu0 %v1016
      %v1131 = vpop.f32.mrf.mxu0
      %v1132 = vadd.f32 0.0, %v1131
      %1133 = vmatmul.f32.gmra.mxu0 %v1019
      %v1134 = vpop.f32.mrf.mxu0
      %v1135 = vadd.f32 0.0, %v1134
      %1136 = vmatmul.f32.gmra.mxu0 %v1022
      %v1137 = vpop.f32.mrf.mxu0
      %v1138 = vadd.f32 0.0, %v1137
      %1139 = vmatmul.f32.gmra.mxu0 %v1025
      %v1140 = vpop.f32.mrf.mxu0
      %v1141 = vadd.f32 0.0, %v1140
      %1142 = vmatmul.f32.gmra.mxu0 %v1028
      %v1143 = vpop.f32.mrf.mxu0
      %v1144 = vadd.f32 0.0, %v1143
      %1145 = vmatmul.f32.gmra.mxu0 %v1031
      %v1146 = vpop.f32.mrf.mxu0
      %v1147 = vadd.f32 0.0, %v1146
      %1148 = vmatmul.f32.gmra.mxu0 %v1034
      %v1149 = vpop.f32.mrf.mxu0
      %v1150 = vadd.f32 0.0, %v1149
      %1151 = vmatmul.f32.gmra.mxu0 %v1037
      %v1152 = vpop.f32.mrf.mxu0
      %v1153 = vadd.f32 0.0, %v1152
      %1154 = vmatmul.f32.gmra.mxu0 %v1040
      %v1155 = vpop.f32.mrf.mxu0
      %v1156 = vadd.f32 0.0, %v1155
      %1157 = vdwg.mxu0
      %v1158 = vadd.f32 %v848, %v1063
      %v1159 = vadd.f32 %v851, %v1066
      %v1160 = vadd.f32 %v854, %v1069
      %v1161 = vadd.f32 %v857, %v1072
      %v1162 = vadd.f32 %v860, %v1075
      %v1163 = vadd.f32 %v863, %v1078
      %v1164 = vadd.f32 %v866, %v1081
      %v1165 = vadd.f32 %v869, %v1084
      %v1166 = vadd.f32 %v872, %v1087
      %v1167 = vadd.f32 %v875, %v1090
      %v1168 = vadd.f32 %v878, %v1093
      %v1169 = vadd.f32 %v881, %v1096
      %v1170 = vadd.f32 %v884, %v1099
      %v1171 = vadd.f32 %v887, %v1102
      %v1172 = vadd.f32 %v890, %v1105
      %v1173 = vadd.f32 %v893, %v1108
      %v1174 = vadd.f32 %v896, %v1111
      %v1175 = vadd.f32 %v899, %v1114
      %v1176 = vadd.f32 %v902, %v1117
      %v1177 = vadd.f32 %v905, %v1120
      %v1178 = vadd.f32 %v908, %v1123
      %v1179 = vadd.f32 %v911, %v1126
      %v1180 = vadd.f32 %v914, %v1129
      %v1181 = vadd.f32 %v917, %v1132
      %v1182 = vadd.f32 %v920, %v1135
      %v1183 = vadd.f32 %v923, %v1138
      %v1184 = vadd.f32 %v926, %v1141
      %v1185 = vadd.f32 %v929, %v1144
      %v1186 = vadd.f32 %v932, %v1147
      %v1187 = vadd.f32 %v935, %v1150
      %v1188 = vadd.f32 %v938, %v1153
      %v1189 = vadd.f32 %v941, %v1156
      %v1190 = vld [vmem:[%s2] sm:$0x1]
      %v1192 = vperm.slane %v1190, 0
      %v1194 = vmul.f32 %v1158, %v1192
      %v1195 = vmul.f32 %v1159, %v1192
      %v1196 = vmul.f32 %v1160, %v1192
      %v1197 = vmul.f32 %v1161, %v1192
      %v1198 = vmul.f32 %v1162, %v1192
      %v1199 = vmul.f32 %v1163, %v1192
      %v1200 = vmul.f32 %v1164, %v1192
      %v1201 = vmul.f32 %v1165, %v1192
      %v1202 = vmul.f32 %v1166, %v1192
      %v1203 = vmul.f32 %v1167, %v1192
      %v1204 = vmul.f32 %v1168, %v1192
      %v1205 = vmul.f32 %v1169, %v1192
      %v1206 = vmul.f32 %v1170, %v1192
      %v1207 = vmul.f32 %v1171, %v1192
      %v1208 = vmul.f32 %v1172, %v1192
      %v1209 = vmul.f32 %v1173, %v1192
      %v1210 = vmul.f32 %v1174, %v1192
      %v1211 = vmul.f32 %v1175, %v1192
      %v1212 = vmul.f32 %v1176, %v1192
      %v1213 = vmul.f32 %v1177, %v1192
      %v1214 = vmul.f32 %v1178, %v1192
      %v1215 = vmul.f32 %v1179, %v1192
      %v1216 = vmul.f32 %v1180, %v1192
      %v1217 = vmul.f32 %v1181, %v1192
      %v1218 = vmul.f32 %v1182, %v1192
      %v1219 = vmul.f32 %v1183, %v1192
      %v1220 = vmul.f32 %v1184, %v1192
      %v1221 = vmul.f32 %v1185, %v1192
      %v1222 = vmul.f32 %v1186, %v1192
      %v1223 = vmul.f32 %v1187, %v1192
      %v1224 = vmul.f32 %v1188, %v1192
      %v1225 = vmul.f32 %v1189, %v1192
      %v1226 = vld [vmem:[%s3] sm:$0x1]
      %v1228 = vperm.slane %v1226, 0
      %v1230 = vadd.f32 %v1194, %v1228
      %v1231 = vadd.f32 %v1195, %v1228
      %v1232 = vadd.f32 %v1196, %v1228
      %v1233 = vadd.f32 %v1197, %v1228
      %v1234 = vadd.f32 %v1198, %v1228
      %v1235 = vadd.f32 %v1199, %v1228
      %v1236 = vadd.f32 %v1200, %v1228
      %v1237 = vadd.f32 %v1201, %v1228
      %v1238 = vadd.f32 %v1202, %v1228
      %v1239 = vadd.f32 %v1203, %v1228
      %v1240 = vadd.f32 %v1204, %v1228
      %v1241 = vadd.f32 %v1205, %v1228
      %v1242 = vadd.f32 %v1206, %v1228
      %v1243 = vadd.f32 %v1207, %v1228
      %v1244 = vadd.f32 %v1208, %v1228
      %v1245 = vadd.f32 %v1209, %v1228
      %v1246 = vadd.f32 %v1210, %v1228
      %v1247 = vadd.f32 %v1211, %v1228
      %v1248 = vadd.f32 %v1212, %v1228
      %v1249 = vadd.f32 %v1213, %v1228
      %v1250 = vadd.f32 %v1214, %v1228
      %v1251 = vadd.f32 %v1215, %v1228
      %v1252 = vadd.f32 %v1216, %v1228
      %v1253 = vadd.f32 %v1217, %v1228
      %v1254 = vadd.f32 %v1218, %v1228
      %v1255 = vadd.f32 %v1219, %v1228
      %v1256 = vadd.f32 %v1220, %v1228
      %v1257 = vadd.f32 %v1221, %v1228
      %v1258 = vadd.f32 %v1222, %v1228
      %v1259 = vadd.f32 %v1223, %v1228
      %v1260 = vadd.f32 %v1224, %v1228
      %v1261 = vadd.f32 %v1225, %v1228
      %v1262 = vxor.u32 %v1230, 2147483648
      %v1263 = vxor.u32 %v1231, 2147483648
      %v1264 = vxor.u32 %v1232, 2147483648
      %v1265 = vxor.u32 %v1233, 2147483648
      %v1266 = vxor.u32 %v1234, 2147483648
      %v1267 = vxor.u32 %v1235, 2147483648
      %v1268 = vxor.u32 %v1236, 2147483648
      %v1269 = vxor.u32 %v1237, 2147483648
      %v1270 = vxor.u32 %v1238, 2147483648
      %v1271 = vxor.u32 %v1239, 2147483648
      %v1272 = vxor.u32 %v1240, 2147483648
      %v1273 = vxor.u32 %v1241, 2147483648
      %v1274 = vxor.u32 %v1242, 2147483648
      %v1275 = vxor.u32 %v1243, 2147483648
      %v1276 = vxor.u32 %v1244, 2147483648
      %v1277 = vxor.u32 %v1245, 2147483648
      %v1278 = vxor.u32 %v1246, 2147483648
      %v1279 = vxor.u32 %v1247, 2147483648
      %v1280 = vxor.u32 %v1248, 2147483648
      %v1281 = vxor.u32 %v1249, 2147483648
      %v1282 = vxor.u32 %v1250, 2147483648
      %v1283 = vxor.u32 %v1251, 2147483648
      %v1284 = vxor.u32 %v1252, 2147483648
      %v1285 = vxor.u32 %v1253, 2147483648
      %v1286 = vxor.u32 %v1254, 2147483648
      %v1287 = vxor.u32 %v1255, 2147483648
      %v1288 = vxor.u32 %v1256, 2147483648
      %v1289 = vxor.u32 %v1257, 2147483648
      %v1290 = vxor.u32 %v1258, 2147483648
      %v1291 = vxor.u32 %v1259, 2147483648
      %v1292 = vxor.u32 %v1260, 2147483648
      %v1293 = vxor.u32 %v1261, 2147483648
      %v1294 = vmul.f32 %v1262, 1.442695
      %v1295 = vpow.pop %v1294
      %v1296 = vmul.f32 %v1263, 1.442695
      %v1297 = vpow.pop %v1296
      %v1298 = vmul.f32 %v1264, 1.442695
      %v1299 = vpow.pop %v1298
      %v1300 = vmul.f32 %v1265, 1.442695
      %v1301 = vpow.pop %v1300
      %v1302 = vmul.f32 %v1266, 1.442695
      %v1303 = vpow.pop %v1302
      %v1304 = vmul.f32 %v1267, 1.442695
      %v1305 = vpow.pop %v1304
      %v1306 = vmul.f32 %v1268, 1.442695
      %v1307 = vpow.pop %v1306
      %v1308 = vmul.f32 %v1269, 1.442695
      %v1309 = vpow.pop %v1308
      %v1310 = vmul.f32 %v1270, 1.442695
      %v1311 = vpow.pop %v1310
      %v1312 = vmul.f32 %v1271, 1.442695
      %v1313 = vpow.pop %v1312
      %v1314 = vmul.f32 %v1272, 1.442695
      %v1315 = vpow.pop %v1314
      %v1316 = vmul.f32 %v1273, 1.442695
      %v1317 = vpow.pop %v1316
      %v1318 = vmul.f32 %v1274, 1.442695
      %v1319 = vpow.pop %v1318
      %v1320 = vmul.f32 %v1275, 1.442695
      %v1321 = vpow.pop %v1320
      %v1322 = vmul.f32 %v1276, 1.442695
      %v1323 = vpow.pop %v1322
      %v1324 = vmul.f32 %v1277, 1.442695
      %v1325 = vpow.pop %v1324
      %v1326 = vmul.f32 %v1278, 1.442695
      %v1327 = vpow.pop %v1326
      %v1328 = vmul.f32 %v1279, 1.442695
      %v1329 = vpow.pop %v1328
      %v1330 = vmul.f32 %v1280, 1.442695
      %v1331 = vpow.pop %v1330
      %v1332 = vmul.f32 %v1281, 1.442695
      %v1333 = vpow.pop %v1332
      %v1334 = vmul.f32 %v1282, 1.442695
      %v1335 = vpow.pop %v1334
      %v1336 = vmul.f32 %v1283, 1.442695
      %v1337 = vpow.pop %v1336
      %v1338 = vmul.f32 %v1284, 1.442695
      %v1339 = vpow.pop %v1338
      %v1340 = vmul.f32 %v1285, 1.442695
      %v1341 = vpow.pop %v1340
      %v1342 = vmul.f32 %v1286, 1.442695
      %v1343 = vpow.pop %v1342
      %v1344 = vmul.f32 %v1287, 1.442695
      %v1345 = vpow.pop %v1344
      %v1346 = vmul.f32 %v1288, 1.442695
      %v1347 = vpow.pop %v1346
      %v1348 = vmul.f32 %v1289, 1.442695
      %v1349 = vpow.pop %v1348
      %v1350 = vmul.f32 %v1290, 1.442695
      %v1351 = vpow.pop %v1350
      %v1352 = vmul.f32 %v1291, 1.442695
      %v1353 = vpow.pop %v1352
      %v1354 = vmul.f32 %v1292, 1.442695
      %v1355 = vpow.pop %v1354
      %v1356 = vmul.f32 %v1293, 1.442695
      %v1357 = vpow.pop %v1356
      %v1358 = vadd.f32 %v1295, 1.0
      %v1359 = vadd.f32 %v1297, 1.0
      %v1360 = vadd.f32 %v1299, 1.0
      %v1361 = vadd.f32 %v1301, 1.0
      %v1362 = vadd.f32 %v1303, 1.0
      %v1363 = vadd.f32 %v1305, 1.0
      %v1364 = vadd.f32 %v1307, 1.0
      %v1365 = vadd.f32 %v1309, 1.0
      %v1366 = vadd.f32 %v1311, 1.0
      %v1367 = vadd.f32 %v1313, 1.0
      %v1368 = vadd.f32 %v1315, 1.0
      %v1369 = vadd.f32 %v1317, 1.0
      %v1370 = vadd.f32 %v1319, 1.0
      %v1371 = vadd.f32 %v1321, 1.0
      %v1372 = vadd.f32 %v1323, 1.0
      %v1373 = vadd.f32 %v1325, 1.0
      %v1374 = vadd.f32 %v1327, 1.0
      %v1375 = vadd.f32 %v1329, 1.0
      %v1376 = vadd.f32 %v1331, 1.0
      %v1377 = vadd.f32 %v1333, 1.0
      %v1378 = vadd.f32 %v1335, 1.0
      %v1379 = vadd.f32 %v1337, 1.0
      %v1380 = vadd.f32 %v1339, 1.0
      %v1381 = vadd.f32 %v1341, 1.0
      %v1382 = vadd.f32 %v1343, 1.0
      %v1383 = vadd.f32 %v1345, 1.0
      %v1384 = vadd.f32 %v1347, 1.0
      %v1385 = vadd.f32 %v1349, 1.0
      %v1386 = vadd.f32 %v1351, 1.0
      %v1387 = vadd.f32 %v1353, 1.0
      %v1388 = vadd.f32 %v1355, 1.0
      %v1389 = vadd.f32 %v1357, 1.0
      %v1390 = vrcp.pop %v1358
      %v1391 = vmul.f32 %v1358, %v1390
      %v1392 = vsub.f32 1.0, %v1391
      %v1393 = vmul.f32 %v1390, %v1392
      %v1394 = vadd.f32 %v1390, %v1393
      %vm1395 = vweird.f32 %v1358
      %vm1396 = vweird.f32 %v1390
      %vm1397 = vmor %vm1395, %vm1396
      %v1398 = vsel %vm1397, %v1390, %v1394
      %v1399 = vand.u32 2147483647, %v1358
      %vm1400 = vcmp.eq.f32.partialorder %v1399, 8.507059e+37
      %v1401 = vand.u32 %v1358, 2147483648
      %v1402 = vor.u32 1.1754944e-38, %v1401
      %v1403 = vsel %vm1400, %v1402, %v1398
      %v1404 = vmul.f32 1.0, %v1403
      %v1405 = vrcp.pop %v1359
      %v1406 = vmul.f32 %v1359, %v1405
      %v1407 = vsub.f32 1.0, %v1406
      %v1408 = vmul.f32 %v1405, %v1407
      %v1409 = vadd.f32 %v1405, %v1408
      %vm1410 = vweird.f32 %v1359
      %vm1411 = vweird.f32 %v1405
      %vm1412 = vmor %vm1410, %vm1411
      %v1413 = vsel %vm1412, %v1405, %v1409
      %v1414 = vand.u32 2147483647, %v1359
      %vm1415 = vcmp.eq.f32.partialorder %v1414, 8.507059e+37
      %v1416 = vand.u32 %v1359, 2147483648
      %v1417 = vor.u32 1.1754944e-38, %v1416
      %v1418 = vsel %vm1415, %v1417, %v1413
      %v1419 = vmul.f32 1.0, %v1418
      %v1420 = vrcp.pop %v1360
      %v1421 = vmul.f32 %v1360, %v1420
      %v1422 = vsub.f32 1.0, %v1421
      %v1423 = vmul.f32 %v1420, %v1422
      %v1424 = vadd.f32 %v1420, %v1423
      %vm1425 = vweird.f32 %v1360
      %vm1426 = vweird.f32 %v1420
      %vm1427 = vmor %vm1425, %vm1426
      %v1428 = vsel %vm1427, %v1420, %v1424
      %v1429 = vand.u32 2147483647, %v1360
      %vm1430 = vcmp.eq.f32.partialorder %v1429, 8.507059e+37
      %v1431 = vand.u32 %v1360, 2147483648
      %v1432 = vor.u32 1.1754944e-38, %v1431
      %v1433 = vsel %vm1430, %v1432, %v1428
      %v1434 = vmul.f32 1.0, %v1433
      %v1435 = vrcp.pop %v1361
      %v1436 = vmul.f32 %v1361, %v1435
      %v1437 = vsub.f32 1.0, %v1436
      %v1438 = vmul.f32 %v1435, %v1437
      %v1439 = vadd.f32 %v1435, %v1438
      %vm1440 = vweird.f32 %v1361
      %vm1441 = vweird.f32 %v1435
      %vm1442 = vmor %vm1440, %vm1441
      %v1443 = vsel %vm1442, %v1435, %v1439
      %v1444 = vand.u32 2147483647, %v1361
      %vm1445 = vcmp.eq.f32.partialorder %v1444, 8.507059e+37
      %v1446 = vand.u32 %v1361, 2147483648
      %v1447 = vor.u32 1.1754944e-38, %v1446
      %v1448 = vsel %vm1445, %v1447, %v1443
      %v1449 = vmul.f32 1.0, %v1448
      %v1450 = vrcp.pop %v1362
      %v1451 = vmul.f32 %v1362, %v1450
      %v1452 = vsub.f32 1.0, %v1451
      %v1453 = vmul.f32 %v1450, %v1452
      %v1454 = vadd.f32 %v1450, %v1453
      %vm1455 = vweird.f32 %v1362
      %vm1456 = vweird.f32 %v1450
      %vm1457 = vmor %vm1455, %vm1456
      %v1458 = vsel %vm1457, %v1450, %v1454
      %v1459 = vand.u32 2147483647, %v1362
      %vm1460 = vcmp.eq.f32.partialorder %v1459, 8.507059e+37
      %v1461 = vand.u32 %v1362, 2147483648
      %v1462 = vor.u32 1.1754944e-38, %v1461
      %v1463 = vsel %vm1460, %v1462, %v1458
      %v1464 = vmul.f32 1.0, %v1463
      %v1465 = vrcp.pop %v1363
      %v1466 = vmul.f32 %v1363, %v1465
      %v1467 = vsub.f32 1.0, %v1466
      %v1468 = vmul.f32 %v1465, %v1467
      %v1469 = vadd.f32 %v1465, %v1468
      %vm1470 = vweird.f32 %v1363
      %vm1471 = vweird.f32 %v1465
      %vm1472 = vmor %vm1470, %vm1471
      %v1473 = vsel %vm1472, %v1465, %v1469
      %v1474 = vand.u32 2147483647, %v1363
      %vm1475 = vcmp.eq.f32.partialorder %v1474, 8.507059e+37
      %v1476 = vand.u32 %v1363, 2147483648
      %v1477 = vor.u32 1.1754944e-38, %v1476
      %v1478 = vsel %vm1475, %v1477, %v1473
      %v1479 = vmul.f32 1.0, %v1478
      %v1480 = vrcp.pop %v1364
      %v1481 = vmul.f32 %v1364, %v1480
      %v1482 = vsub.f32 1.0, %v1481
      %v1483 = vmul.f32 %v1480, %v1482
      %v1484 = vadd.f32 %v1480, %v1483
      %vm1485 = vweird.f32 %v1364
      %vm1486 = vweird.f32 %v1480
      %vm1487 = vmor %vm1485, %vm1486
      %v1488 = vsel %vm1487, %v1480, %v1484
      %v1489 = vand.u32 2147483647, %v1364
      %vm1490 = vcmp.eq.f32.partialorder %v1489, 8.507059e+37
      %v1491 = vand.u32 %v1364, 2147483648
      %v1492 = vor.u32 1.1754944e-38, %v1491
      %v1493 = vsel %vm1490, %v1492, %v1488
      %v1494 = vmul.f32 1.0, %v1493
      %v1495 = vrcp.pop %v1365
      %v1496 = vmul.f32 %v1365, %v1495
      %v1497 = vsub.f32 1.0, %v1496
      %v1498 = vmul.f32 %v1495, %v1497
      %v1499 = vadd.f32 %v1495, %v1498
      %vm1500 = vweird.f32 %v1365
      %vm1501 = vweird.f32 %v1495
      %vm1502 = vmor %vm1500, %vm1501
      %v1503 = vsel %vm1502, %v1495, %v1499
      %v1504 = vand.u32 2147483647, %v1365
      %vm1505 = vcmp.eq.f32.partialorder %v1504, 8.507059e+37
      %v1506 = vand.u32 %v1365, 2147483648
      %v1507 = vor.u32 1.1754944e-38, %v1506
      %v1508 = vsel %vm1505, %v1507, %v1503
      %v1509 = vmul.f32 1.0, %v1508
      %v1510 = vrcp.pop %v1366
      %v1511 = vmul.f32 %v1366, %v1510
      %v1512 = vsub.f32 1.0, %v1511
      %v1513 = vmul.f32 %v1510, %v1512
      %v1514 = vadd.f32 %v1510, %v1513
      %vm1515 = vweird.f32 %v1366
      %vm1516 = vweird.f32 %v1510
      %vm1517 = vmor %vm1515, %vm1516
      %v1518 = vsel %vm1517, %v1510, %v1514
      %v1519 = vand.u32 2147483647, %v1366
      %vm1520 = vcmp.eq.f32.partialorder %v1519, 8.507059e+37
      %v1521 = vand.u32 %v1366, 2147483648
      %v1522 = vor.u32 1.1754944e-38, %v1521
      %v1523 = vsel %vm1520, %v1522, %v1518
      %v1524 = vmul.f32 1.0, %v1523
      %v1525 = vrcp.pop %v1367
      %v1526 = vmul.f32 %v1367, %v1525
      %v1527 = vsub.f32 1.0, %v1526
      %v1528 = vmul.f32 %v1525, %v1527
      %v1529 = vadd.f32 %v1525, %v1528
      %vm1530 = vweird.f32 %v1367
      %vm1531 = vweird.f32 %v1525
      %vm1532 = vmor %vm1530, %vm1531
      %v1533 = vsel %vm1532, %v1525, %v1529
      %v1534 = vand.u32 2147483647, %v1367
      %vm1535 = vcmp.eq.f32.partialorder %v1534, 8.507059e+37
      %v1536 = vand.u32 %v1367, 2147483648
      %v1537 = vor.u32 1.1754944e-38, %v1536
      %v1538 = vsel %vm1535, %v1537, %v1533
      %v1539 = vmul.f32 1.0, %v1538
      %v1540 = vrcp.pop %v1368
      %v1541 = vmul.f32 %v1368, %v1540
      %v1542 = vsub.f32 1.0, %v1541
      %v1543 = vmul.f32 %v1540, %v1542
      %v1544 = vadd.f32 %v1540, %v1543
      %vm1545 = vweird.f32 %v1368
      %vm1546 = vweird.f32 %v1540
      %vm1547 = vmor %vm1545, %vm1546
      %v1548 = vsel %vm1547, %v1540, %v1544
      %v1549 = vand.u32 2147483647, %v1368
      %vm1550 = vcmp.eq.f32.partialorder %v1549, 8.507059e+37
      %v1551 = vand.u32 %v1368, 2147483648
      %v1552 = vor.u32 1.1754944e-38, %v1551
      %v1553 = vsel %vm1550, %v1552, %v1548
      %v1554 = vmul.f32 1.0, %v1553
      %v1555 = vrcp.pop %v1369
      %v1556 = vmul.f32 %v1369, %v1555
      %v1557 = vsub.f32 1.0, %v1556
      %v1558 = vmul.f32 %v1555, %v1557
      %v1559 = vadd.f32 %v1555, %v1558
      %vm1560 = vweird.f32 %v1369
      %vm1561 = vweird.f32 %v1555
      %vm1562 = vmor %vm1560, %vm1561
      %v1563 = vsel %vm1562, %v1555, %v1559
      %v1564 = vand.u32 2147483647, %v1369
      %vm1565 = vcmp.eq.f32.partialorder %v1564, 8.507059e+37
      %v1566 = vand.u32 %v1369, 2147483648
      %v1567 = vor.u32 1.1754944e-38, %v1566
      %v1568 = vsel %vm1565, %v1567, %v1563
      %v1569 = vmul.f32 1.0, %v1568
      %v1570 = vrcp.pop %v1370
      %v1571 = vmul.f32 %v1370, %v1570
      %v1572 = vsub.f32 1.0, %v1571
      %v1573 = vmul.f32 %v1570, %v1572
      %v1574 = vadd.f32 %v1570, %v1573
      %vm1575 = vweird.f32 %v1370
      %vm1576 = vweird.f32 %v1570
      %vm1577 = vmor %vm1575, %vm1576
      %v1578 = vsel %vm1577, %v1570, %v1574
      %v1579 = vand.u32 2147483647, %v1370
      %vm1580 = vcmp.eq.f32.partialorder %v1579, 8.507059e+37
      %v1581 = vand.u32 %v1370, 2147483648
      %v1582 = vor.u32 1.1754944e-38, %v1581
      %v1583 = vsel %vm1580, %v1582, %v1578
      %v1584 = vmul.f32 1.0, %v1583
      %v1585 = vrcp.pop %v1371
      %v1586 = vmul.f32 %v1371, %v1585
      %v1587 = vsub.f32 1.0, %v1586
      %v1588 = vmul.f32 %v1585, %v1587
      %v1589 = vadd.f32 %v1585, %v1588
      %vm1590 = vweird.f32 %v1371
      %vm1591 = vweird.f32 %v1585
      %vm1592 = vmor %vm1590, %vm1591
      %v1593 = vsel %vm1592, %v1585, %v1589
      %v1594 = vand.u32 2147483647, %v1371
      %vm1595 = vcmp.eq.f32.partialorder %v1594, 8.507059e+37
      %v1596 = vand.u32 %v1371, 2147483648
      %v1597 = vor.u32 1.1754944e-38, %v1596
      %v1598 = vsel %vm1595, %v1597, %v1593
      %v1599 = vmul.f32 1.0, %v1598
      %v1600 = vrcp.pop %v1372
      %v1601 = vmul.f32 %v1372, %v1600
      %v1602 = vsub.f32 1.0, %v1601
      %v1603 = vmul.f32 %v1600, %v1602
      %v1604 = vadd.f32 %v1600, %v1603
      %vm1605 = vweird.f32 %v1372
      %vm1606 = vweird.f32 %v1600
      %vm1607 = vmor %vm1605, %vm1606
      %v1608 = vsel %vm1607, %v1600, %v1604
      %v1609 = vand.u32 2147483647, %v1372
      %vm1610 = vcmp.eq.f32.partialorder %v1609, 8.507059e+37
      %v1611 = vand.u32 %v1372, 2147483648
      %v1612 = vor.u32 1.1754944e-38, %v1611
      %v1613 = vsel %vm1610, %v1612, %v1608
      %v1614 = vmul.f32 1.0, %v1613
      %v1615 = vrcp.pop %v1373
      %v1616 = vmul.f32 %v1373, %v1615
      %v1617 = vsub.f32 1.0, %v1616
      %v1618 = vmul.f32 %v1615, %v1617
      %v1619 = vadd.f32 %v1615, %v1618
      %vm1620 = vweird.f32 %v1373
      %vm1621 = vweird.f32 %v1615
      %vm1622 = vmor %vm1620, %vm1621
      %v1623 = vsel %vm1622, %v1615, %v1619
      %v1624 = vand.u32 2147483647, %v1373
      %vm1625 = vcmp.eq.f32.partialorder %v1624, 8.507059e+37
      %v1626 = vand.u32 %v1373, 2147483648
      %v1627 = vor.u32 1.1754944e-38, %v1626
      %v1628 = vsel %vm1625, %v1627, %v1623
      %v1629 = vmul.f32 1.0, %v1628
      %v1630 = vrcp.pop %v1374
      %v1631 = vmul.f32 %v1374, %v1630
      %v1632 = vsub.f32 1.0, %v1631
      %v1633 = vmul.f32 %v1630, %v1632
      %v1634 = vadd.f32 %v1630, %v1633
      %vm1635 = vweird.f32 %v1374
      %vm1636 = vweird.f32 %v1630
      %vm1637 = vmor %vm1635, %vm1636
      %v1638 = vsel %vm1637, %v1630, %v1634
      %v1639 = vand.u32 2147483647, %v1374
      %vm1640 = vcmp.eq.f32.partialorder %v1639, 8.507059e+37
      %v1641 = vand.u32 %v1374, 2147483648
      %v1642 = vor.u32 1.1754944e-38, %v1641
      %v1643 = vsel %vm1640, %v1642, %v1638
      %v1644 = vmul.f32 1.0, %v1643
      %v1645 = vrcp.pop %v1375
      %v1646 = vmul.f32 %v1375, %v1645
      %v1647 = vsub.f32 1.0, %v1646
      %v1648 = vmul.f32 %v1645, %v1647
      %v1649 = vadd.f32 %v1645, %v1648
      %vm1650 = vweird.f32 %v1375
      %vm1651 = vweird.f32 %v1645
      %vm1652 = vmor %vm1650, %vm1651
      %v1653 = vsel %vm1652, %v1645, %v1649
      %v1654 = vand.u32 2147483647, %v1375
      %vm1655 = vcmp.eq.f32.partialorder %v1654, 8.507059e+37
      %v1656 = vand.u32 %v1375, 2147483648
      %v1657 = vor.u32 1.1754944e-38, %v1656
      %v1658 = vsel %vm1655, %v1657, %v1653
      %v1659 = vmul.f32 1.0, %v1658
      %v1660 = vrcp.pop %v1376
      %v1661 = vmul.f32 %v1376, %v1660
      %v1662 = vsub.f32 1.0, %v1661
      %v1663 = vmul.f32 %v1660, %v1662
      %v1664 = vadd.f32 %v1660, %v1663
      %vm1665 = vweird.f32 %v1376
      %vm1666 = vweird.f32 %v1660
      %vm1667 = vmor %vm1665, %vm1666
      %v1668 = vsel %vm1667, %v1660, %v1664
      %v1669 = vand.u32 2147483647, %v1376
      %vm1670 = vcmp.eq.f32.partialorder %v1669, 8.507059e+37
      %v1671 = vand.u32 %v1376, 2147483648
      %v1672 = vor.u32 1.1754944e-38, %v1671
      %v1673 = vsel %vm1670, %v1672, %v1668
      %v1674 = vmul.f32 1.0, %v1673
      %v1675 = vrcp.pop %v1377
      %v1676 = vmul.f32 %v1377, %v1675
      %v1677 = vsub.f32 1.0, %v1676
      %v1678 = vmul.f32 %v1675, %v1677
      %v1679 = vadd.f32 %v1675, %v1678
      %vm1680 = vweird.f32 %v1377
      %vm1681 = vweird.f32 %v1675
      %vm1682 = vmor %vm1680, %vm1681
      %v1683 = vsel %vm1682, %v1675, %v1679
      %v1684 = vand.u32 2147483647, %v1377
      %vm1685 = vcmp.eq.f32.partialorder %v1684, 8.507059e+37
      %v1686 = vand.u32 %v1377, 2147483648
      %v1687 = vor.u32 1.1754944e-38, %v1686
      %v1688 = vsel %vm1685, %v1687, %v1683
      %v1689 = vmul.f32 1.0, %v1688
      %v1690 = vrcp.pop %v1378
      %v1691 = vmul.f32 %v1378, %v1690
      %v1692 = vsub.f32 1.0, %v1691
      %v1693 = vmul.f32 %v1690, %v1692
      %v1694 = vadd.f32 %v1690, %v1693
      %vm1695 = vweird.f32 %v1378
      %vm1696 = vweird.f32 %v1690
      %vm1697 = vmor %vm1695, %vm1696
      %v1698 = vsel %vm1697, %v1690, %v1694
      %v1699 = vand.u32 2147483647, %v1378
      %vm1700 = vcmp.eq.f32.partialorder %v1699, 8.507059e+37
      %v1701 = vand.u32 %v1378, 2147483648
      %v1702 = vor.u32 1.1754944e-38, %v1701
      %v1703 = vsel %vm1700, %v1702, %v1698
      %v1704 = vmul.f32 1.0, %v1703
      %v1705 = vrcp.pop %v1379
      %v1706 = vmul.f32 %v1379, %v1705
      %v1707 = vsub.f32 1.0, %v1706
      %v1708 = vmul.f32 %v1705, %v1707
      %v1709 = vadd.f32 %v1705, %v1708
      %vm1710 = vweird.f32 %v1379
      %vm1711 = vweird.f32 %v1705
      %vm1712 = vmor %vm1710, %vm1711
      %v1713 = vsel %vm1712, %v1705, %v1709
      %v1714 = vand.u32 2147483647, %v1379
      %vm1715 = vcmp.eq.f32.partialorder %v1714, 8.507059e+37
      %v1716 = vand.u32 %v1379, 2147483648
      %v1717 = vor.u32 1.1754944e-38, %v1716
      %v1718 = vsel %vm1715, %v1717, %v1713
      %v1719 = vmul.f32 1.0, %v1718
      %v1720 = vrcp.pop %v1380
      %v1721 = vmul.f32 %v1380, %v1720
      %v1722 = vsub.f32 1.0, %v1721
      %v1723 = vmul.f32 %v1720, %v1722
      %v1724 = vadd.f32 %v1720, %v1723
      %vm1725 = vweird.f32 %v1380
      %vm1726 = vweird.f32 %v1720
      %vm1727 = vmor %vm1725, %vm1726
      %v1728 = vsel %vm1727, %v1720, %v1724
      %v1729 = vand.u32 2147483647, %v1380
      %vm1730 = vcmp.eq.f32.partialorder %v1729, 8.507059e+37
      %v1731 = vand.u32 %v1380, 2147483648
      %v1732 = vor.u32 1.1754944e-38, %v1731
      %v1733 = vsel %vm1730, %v1732, %v1728
      %v1734 = vmul.f32 1.0, %v1733
      %v1735 = vrcp.pop %v1381
      %v1736 = vmul.f32 %v1381, %v1735
      %v1737 = vsub.f32 1.0, %v1736
      %v1738 = vmul.f32 %v1735, %v1737
      %v1739 = vadd.f32 %v1735, %v1738
      %vm1740 = vweird.f32 %v1381
      %vm1741 = vweird.f32 %v1735
      %vm1742 = vmor %vm1740, %vm1741
      %v1743 = vsel %vm1742, %v1735, %v1739
      %v1744 = vand.u32 2147483647, %v1381
      %vm1745 = vcmp.eq.f32.partialorder %v1744, 8.507059e+37
      %v1746 = vand.u32 %v1381, 2147483648
      %v1747 = vor.u32 1.1754944e-38, %v1746
      %v1748 = vsel %vm1745, %v1747, %v1743
      %v1749 = vmul.f32 1.0, %v1748
      %v1750 = vrcp.pop %v1382
      %v1751 = vmul.f32 %v1382, %v1750
      %v1752 = vsub.f32 1.0, %v1751
      %v1753 = vmul.f32 %v1750, %v1752
      %v1754 = vadd.f32 %v1750, %v1753
      %vm1755 = vweird.f32 %v1382
      %vm1756 = vweird.f32 %v1750
      %vm1757 = vmor %vm1755, %vm1756
      %v1758 = vsel %vm1757, %v1750, %v1754
      %v1759 = vand.u32 2147483647, %v1382
      %vm1760 = vcmp.eq.f32.partialorder %v1759, 8.507059e+37
      %v1761 = vand.u32 %v1382, 2147483648
      %v1762 = vor.u32 1.1754944e-38, %v1761
      %v1763 = vsel %vm1760, %v1762, %v1758
      %v1764 = vmul.f32 1.0, %v1763
      %v1765 = vrcp.pop %v1383
      %v1766 = vmul.f32 %v1383, %v1765
      %v1767 = vsub.f32 1.0, %v1766
      %v1768 = vmul.f32 %v1765, %v1767
      %v1769 = vadd.f32 %v1765, %v1768
      %vm1770 = vweird.f32 %v1383
      %vm1771 = vweird.f32 %v1765
      %vm1772 = vmor %vm1770, %vm1771
      %v1773 = vsel %vm1772, %v1765, %v1769
      %v1774 = vand.u32 2147483647, %v1383
      %vm1775 = vcmp.eq.f32.partialorder %v1774, 8.507059e+37
      %v1776 = vand.u32 %v1383, 2147483648
      %v1777 = vor.u32 1.1754944e-38, %v1776
      %v1778 = vsel %vm1775, %v1777, %v1773
      %v1779 = vmul.f32 1.0, %v1778
      %v1780 = vrcp.pop %v1384
      %v1781 = vmul.f32 %v1384, %v1780
      %v1782 = vsub.f32 1.0, %v1781
      %v1783 = vmul.f32 %v1780, %v1782
      %v1784 = vadd.f32 %v1780, %v1783
      %vm1785 = vweird.f32 %v1384
      %vm1786 = vweird.f32 %v1780
      %vm1787 = vmor %vm1785, %vm1786
      %v1788 = vsel %vm1787, %v1780, %v1784
      %v1789 = vand.u32 2147483647, %v1384
      %vm1790 = vcmp.eq.f32.partialorder %v1789, 8.507059e+37
      %v1791 = vand.u32 %v1384, 2147483648
      %v1792 = vor.u32 1.1754944e-38, %v1791
      %v1793 = vsel %vm1790, %v1792, %v1788
      %v1794 = vmul.f32 1.0, %v1793
      %v1795 = vrcp.pop %v1385
      %v1796 = vmul.f32 %v1385, %v1795
      %v1797 = vsub.f32 1.0, %v1796
      %v1798 = vmul.f32 %v1795, %v1797
      %v1799 = vadd.f32 %v1795, %v1798
      %vm1800 = vweird.f32 %v1385
      %vm1801 = vweird.f32 %v1795
      %vm1802 = vmor %vm1800, %vm1801
      %v1803 = vsel %vm1802, %v1795, %v1799
      %v1804 = vand.u32 2147483647, %v1385
      %vm1805 = vcmp.eq.f32.partialorder %v1804, 8.507059e+37
      %v1806 = vand.u32 %v1385, 2147483648
      %v1807 = vor.u32 1.1754944e-38, %v1806
      %v1808 = vsel %vm1805, %v1807, %v1803
      %v1809 = vmul.f32 1.0, %v1808
      %v1810 = vrcp.pop %v1386
      %v1811 = vmul.f32 %v1386, %v1810
      %v1812 = vsub.f32 1.0, %v1811
      %v1813 = vmul.f32 %v1810, %v1812
      %v1814 = vadd.f32 %v1810, %v1813
      %vm1815 = vweird.f32 %v1386
      %vm1816 = vweird.f32 %v1810
      %vm1817 = vmor %vm1815, %vm1816
      %v1818 = vsel %vm1817, %v1810, %v1814
      %v1819 = vand.u32 2147483647, %v1386
      %vm1820 = vcmp.eq.f32.partialorder %v1819, 8.507059e+37
      %v1821 = vand.u32 %v1386, 2147483648
      %v1822 = vor.u32 1.1754944e-38, %v1821
      %v1823 = vsel %vm1820, %v1822, %v1818
      %v1824 = vmul.f32 1.0, %v1823
      %v1825 = vrcp.pop %v1387
      %v1826 = vmul.f32 %v1387, %v1825
      %v1827 = vsub.f32 1.0, %v1826
      %v1828 = vmul.f32 %v1825, %v1827
      %v1829 = vadd.f32 %v1825, %v1828
      %vm1830 = vweird.f32 %v1387
      %vm1831 = vweird.f32 %v1825
      %vm1832 = vmor %vm1830, %vm1831
      %v1833 = vsel %vm1832, %v1825, %v1829
      %v1834 = vand.u32 2147483647, %v1387
      %vm1835 = vcmp.eq.f32.partialorder %v1834, 8.507059e+37
      %v1836 = vand.u32 %v1387, 2147483648
      %v1837 = vor.u32 1.1754944e-38, %v1836
      %v1838 = vsel %vm1835, %v1837, %v1833
      %v1839 = vmul.f32 1.0, %v1838
      %v1840 = vrcp.pop %v1388
      %v1841 = vmul.f32 %v1388, %v1840
      %v1842 = vsub.f32 1.0, %v1841
      %v1843 = vmul.f32 %v1840, %v1842
      %v1844 = vadd.f32 %v1840, %v1843
      %vm1845 = vweird.f32 %v1388
      %vm1846 = vweird.f32 %v1840
      %vm1847 = vmor %vm1845, %vm1846
      %v1848 = vsel %vm1847, %v1840, %v1844
      %v1849 = vand.u32 2147483647, %v1388
      %vm1850 = vcmp.eq.f32.partialorder %v1849, 8.507059e+37
      %v1851 = vand.u32 %v1388, 2147483648
      %v1852 = vor.u32 1.1754944e-38, %v1851
      %v1853 = vsel %vm1850, %v1852, %v1848
      %v1854 = vmul.f32 1.0, %v1853
      %v1855 = vrcp.pop %v1389
      %v1856 = vmul.f32 %v1389, %v1855
      %v1857 = vsub.f32 1.0, %v1856
      %v1858 = vmul.f32 %v1855, %v1857
      %v1859 = vadd.f32 %v1855, %v1858
      %vm1860 = vweird.f32 %v1389
      %vm1861 = vweird.f32 %v1855
      %vm1862 = vmor %vm1860, %vm1861
      %v1863 = vsel %vm1862, %v1855, %v1859
      %v1864 = vand.u32 2147483647, %v1389
      %vm1865 = vcmp.eq.f32.partialorder %v1864, 8.507059e+37
      %v1866 = vand.u32 %v1389, 2147483648
      %v1867 = vor.u32 1.1754944e-38, %v1866
      %v1868 = vsel %vm1865, %v1867, %v1863
      %v1869 = vmul.f32 1.0, %v1868
      %v1870 = vmul.f32 %v1230, %v1404
      %v1871 = vmul.f32 %v1231, %v1419
      %v1872 = vmul.f32 %v1232, %v1434
      %v1873 = vmul.f32 %v1233, %v1449
      %v1874 = vmul.f32 %v1234, %v1464
      %v1875 = vmul.f32 %v1235, %v1479
      %v1876 = vmul.f32 %v1236, %v1494
      %v1877 = vmul.f32 %v1237, %v1509
      %v1878 = vmul.f32 %v1238, %v1524
      %v1879 = vmul.f32 %v1239, %v1539
      %v1880 = vmul.f32 %v1240, %v1554
      %v1881 = vmul.f32 %v1241, %v1569
      %v1882 = vmul.f32 %v1242, %v1584
      %v1883 = vmul.f32 %v1243, %v1599
      %v1884 = vmul.f32 %v1244, %v1614
      %v1885 = vmul.f32 %v1245, %v1629
      %v1886 = vmul.f32 %v1246, %v1644
      %v1887 = vmul.f32 %v1247, %v1659
      %v1888 = vmul.f32 %v1248, %v1674
      %v1889 = vmul.f32 %v1249, %v1689
      %v1890 = vmul.f32 %v1250, %v1704
      %v1891 = vmul.f32 %v1251, %v1719
      %v1892 = vmul.f32 %v1252, %v1734
      %v1893 = vmul.f32 %v1253, %v1749
      %v1894 = vmul.f32 %v1254, %v1764
      %v1895 = vmul.f32 %v1255, %v1779
      %v1896 = vmul.f32 %v1256, %v1794
      %v1897 = vmul.f32 %v1257, %v1809
      %v1898 = vmul.f32 %v1258, %v1824
      %v1899 = vmul.f32 %v1259, %v1839
      %v1900 = vmul.f32 %v1260, %v1854
      %v1901 = vmul.f32 %v1261, %v1869
      %v1902 = vadd.f32 %v1870, %v1871
      %v1903 = vadd.f32 %v1902, %v1872
      %v1904 = vadd.f32 %v1903, %v1873
      %v1905 = vadd.f32 %v1904, %v1874
      %v1906 = vadd.f32 %v1905, %v1875
      %v1907 = vadd.f32 %v1906, %v1876
      %v1908 = vadd.f32 %v1907, %v1877
      %v1909 = vadd.f32 %v1908, %v1878
      %v1910 = vadd.f32 %v1909, %v1879
      %v1911 = vadd.f32 %v1910, %v1880
      %v1912 = vadd.f32 %v1911, %v1881
      %v1913 = vadd.f32 %v1912, %v1882
      %v1914 = vadd.f32 %v1913, %v1883
      %v1915 = vadd.f32 %v1914, %v1884
      %v1916 = vadd.f32 %v1915, %v1885
      %v1917 = vadd.f32 %v1916, %v1886
      %v1918 = vadd.f32 %v1917, %v1887
      %v1919 = vadd.f32 %v1918, %v1888
      %v1920 = vadd.f32 %v1919, %v1889
      %v1921 = vadd.f32 %v1920, %v1890
      %v1922 = vadd.f32 %v1921, %v1891
      %v1923 = vadd.f32 %v1922, %v1892
      %v1924 = vadd.f32 %v1923, %v1893
      %v1925 = vadd.f32 %v1924, %v1894
      %v1926 = vadd.f32 %v1925, %v1895
      %v1927 = vadd.f32 %v1926, %v1896
      %v1928 = vadd.f32 %v1927, %v1897
      %v1929 = vadd.f32 %v1928, %v1898
      %v1930 = vadd.f32 %v1929, %v1899
      %v1931 = vadd.f32 %v1930, %v1900
      %v1932 = vadd.f32 %v1931, %v1901
      %v1933 = vrot.slane %v1932, 4
      %v1934 = vadd.f32 %v1932, %v1933
      %v1935 = vrot.slane %v1934, 2
      %v1936 = vadd.f32 %v1934, %v1935
      %v1937 = vrot.slane %v1936, 1
      %v1938 = vadd.f32 %v1936, %v1937
      %v1939 = vrcp.pop 256.0
      %v1940 = vmul.f32 256.0, %v1939
      %v1941 = vsub.f32 1.0, %v1940
      %v1942 = vmul.f32 %v1939, %v1941
      %v1943 = vadd.f32 %v1939, %v1942
      %vm1944 = vweird.f32 %v1939
      %v1945 = vsel %vm1944, %v1939, %v1943
      %v1946 = vmul.f32 %v1938, %v1945
      %v1947 = vld [vmem:[%s4] sm:$0xff]
      %v1948 = vld [vmem:[%s4 + $0x8] sm:$0xff]
      %v1949 = vld [vmem:[%s4 + $0x10] sm:$0xff]
      %v1950 = vld [vmem:[%s4 + $0x18] sm:$0xff]
      %v1951 = vld [vmem:[%s4 + $0x20] sm:$0xff]
      %v1952 = vld [vmem:[%s4 + $0x28] sm:$0xff]
      %v1953 = vld [vmem:[%s4 + $0x30] sm:$0xff]
      %v1954 = vld [vmem:[%s4 + $0x38] sm:$0xff]
      %v1955 = vld [vmem:[%s4 + $0x40] sm:$0xff]
      %v1956 = vld [vmem:[%s4 + $0x48] sm:$0xff]
      %v1957 = vld [vmem:[%s4 + $0x50] sm:$0xff]
      %v1958 = vld [vmem:[%s4 + $0x58] sm:$0xff]
      %v1959 = vld [vmem:[%s4 + $0x60] sm:$0xff]
      %v1960 = vld [vmem:[%s4 + $0x68] sm:$0xff]
      %v1961 = vld [vmem:[%s4 + $0x70] sm:$0xff]
      %v1962 = vld [vmem:[%s4 + $0x78] sm:$0xff]
      %v1963 = vld [vmem:[%s5] sm:$0x1]
      %1964 = vmatpush.msra.mxu0 %v1962
      %1965 = vmatpush.msra.mxu0 %v1961
      %1966 = vmatpush.msra.mxu0 %v1960
      %1967 = vmatpush.msra.mxu0 %v1959
      %1968 = vmatpush.msra.mxu0 %v1958
      %1969 = vmatpush.msra.mxu0 %v1957
      %1970 = vmatpush.msra.mxu0 %v1956
      %1971 = vmatpush.msra.mxu0 %v1955
      %1972 = vmatpush.msra.mxu0 %v1954
      %1973 = vmatpush.msra.mxu0 %v1953
      %1974 = vmatpush.msra.mxu0 %v1952
      %1975 = vmatpush.msra.mxu0 %v1951
      %1976 = vmatpush.msra.mxu0 %v1950
      %1977 = vmatpush.msra.mxu0 %v1949
      %1978 = vmatpush.msra.mxu0 %v1948
      %1979 = vmatpush.msra.mxu0 %v1947
      %1980 = vmatmul.f32.gmra.mxu0 %v1946
      %v1981 = vpop.f32.mrf.mxu0
      %v1982 = vadd.f32 %v1963, %v1981
      %1983 = vdwg.mxu0
      %v1984 = vmax.f32 %v1982, 0.0
      %v1985 = vld [vmem:[%s6] sm:$0xff]
      %v1986 = vld [vmem:[%s7] sm:$0x1]
      %vm1987 = vcmask 64512
      %v1989 = vsel %vm1987, %v1984, 0
      %1991 = vmatpush.msra.mxu0 0.0
      %1992 = vmatpush.msra.mxu0 0.0
      %1993 = vmatpush.msra.mxu0 0.0
      %1994 = vmatpush.msra.mxu0 0.0
      %1995 = vmatpush.msra.mxu0 0.0
      %1996 = vmatpush.msra.mxu0 0.0
      %1997 = vmatpush.msra.mxu0 0.0
      %1998 = vmatpush.msra.mxu0 0.0
      %1999 = vmatpush.msra.mxu0 0.0
      %2000 = vmatpush.msra.mxu0 0.0
      %2001 = vmatpush.msra.mxu0 0.0
      %2002 = vmatpush.msra.mxu0 0.0
      %2003 = vmatpush.msra.mxu0 0.0
      %2004 = vmatpush.msra.mxu0 0.0
      %2005 = vmatpush.msra.mxu0 0.0
      %2006 = vmatpush.msra.mxu0 %v1985
      %2007 = vmatmul.f32.gmra.mxu0 %v1989
      %v2008 = vpop.f32.mrf.mxu0
      %v2009 = vadd.f32 %v1986, %v2008
      %2010 = vdwg.mxu0
      %v2011 = vxor.u32 %v2009, 2147483648
      %v2012 = vmul.f32 %v2011, 1.442695
      %v2013 = vpow.pop %v2012
      %v2014 = vadd.f32 %v2013, 1.0
      %v2015 = vrcp.pop %v2014
      %v2016 = vmul.f32 %v2014, %v2015
      %v2017 = vsub.f32 1.0, %v2016
      %v2018 = vmul.f32 %v2015, %v2017
      %v2019 = vadd.f32 %v2015, %v2018
      %vm2020 = vweird.f32 %v2014
      %vm2021 = vweird.f32 %v2015
      %vm2022 = vmor %vm2020, %vm2021
      %v2023 = vsel %vm2022, %v2015, %v2019
      %v2024 = vand.u32 2147483647, %v2014
      %vm2025 = vcmp.eq.f32.partialorder %v2024, 8.507059e+37
      %v2026 = vand.u32 %v2014, 2147483648
      %v2027 = vor.u32 1.1754944e-38, %v2026
      %v2028 = vsel %vm2025, %v2027, %v2023
      %v2029 = vmul.f32 1.0, %v2028
      %v2030 = vperm.slane %v2029, 0
      %v2031 = vmul.f32 %v1870, %v2030
      %v2032 = vmul.f32 %v1871, %v2030
      %v2033 = vmul.f32 %v1872, %v2030
      %v2034 = vmul.f32 %v1873, %v2030
      %v2035 = vmul.f32 %v1874, %v2030
      %v2036 = vmul.f32 %v1875, %v2030
      %v2037 = vmul.f32 %v1876, %v2030
      %v2038 = vmul.f32 %v1877, %v2030
      %v2039 = vmul.f32 %v1878, %v2030
      %v2040 = vmul.f32 %v1879, %v2030
      %v2041 = vmul.f32 %v1880, %v2030
      %v2042 = vmul.f32 %v1881, %v2030
      %v2043 = vmul.f32 %v1882, %v2030
      %v2044 = vmul.f32 %v1883, %v2030
      %v2045 = vmul.f32 %v1884, %v2030
      %v2046 = vmul.f32 %v1885, %v2030
      %v2047 = vmul.f32 %v1886, %v2030
      %v2048 = vmul.f32 %v1887, %v2030
      %v2049 = vmul.f32 %v1888, %v2030
      %v2050 = vmul.f32 %v1889, %v2030
      %v2051 = vmul.f32 %v1890, %v2030
      %v2052 = vmul.f32 %v1891, %v2030
      %v2053 = vmul.f32 %v1892, %v2030
      %v2054 = vmul.f32 %v1893, %v2030
      %v2055 = vmul.f32 %v1894, %v2030
      %v2056 = vmul.f32 %v1895, %v2030
      %v2057 = vmul.f32 %v1896, %v2030
      %v2058 = vmul.f32 %v1897, %v2030
      %v2059 = vmul.f32 %v1898, %v2030
      %v2060 = vmul.f32 %v1899, %v2030
      %v2061 = vmul.f32 %v1900, %v2030
      %v2062 = vmul.f32 %v1901, %v2030
      %v2063 = vld [vmem:[%s8] sm:$0xff]
      %v2064 = vld [vmem:[%s8 + $0x8] sm:$0xff]
      %v2065 = vld [vmem:[%s8 + $0x10] sm:$0xff]
      %v2066 = vld [vmem:[%s8 + $0x18] sm:$0xff]
      %v2067 = vld [vmem:[%s8 + $0x20] sm:$0xff]
      %v2068 = vld [vmem:[%s8 + $0x28] sm:$0xff]
      %v2069 = vld [vmem:[%s8 + $0x30] sm:$0xff]
      %v2070 = vld [vmem:[%s8 + $0x38] sm:$0xff]
      %v2071 = vld [vmem:[%s8 + $0x40] sm:$0xff]
      %v2072 = vld [vmem:[%s8 + $0x48] sm:$0xff]
      %v2073 = vld [vmem:[%s8 + $0x50] sm:$0xff]
      %v2074 = vld [vmem:[%s8 + $0x58] sm:$0xff]
      %v2075 = vld [vmem:[%s8 + $0x60] sm:$0xff]
      %v2076 = vld [vmem:[%s8 + $0x68] sm:$0xff]
      %v2077 = vld [vmem:[%s8 + $0x70] sm:$0xff]
      %v2078 = vld [vmem:[%s8 + $0x78] sm:$0xff]
      %2079 = vmatpush.msra.mxu0 %v2078
      %2080 = vmatpush.msra.mxu0 %v2077
      %2081 = vmatpush.msra.mxu0 %v2076
      %2082 = vmatpush.msra.mxu0 %v2075
      %2083 = vmatpush.msra.mxu0 %v2074
      %2084 = vmatpush.msra.mxu0 %v2073
      %2085 = vmatpush.msra.mxu0 %v2072
      %2086 = vmatpush.msra.mxu0 %v2071
      %2087 = vmatpush.msra.mxu0 %v2070
      %2088 = vmatpush.msra.mxu0 %v2069
      %2089 = vmatpush.msra.mxu0 %v2068
      %2090 = vmatpush.msra.mxu0 %v2067
      %2091 = vmatpush.msra.mxu0 %v2066
      %2092 = vmatpush.msra.mxu0 %v2065
      %2093 = vmatpush.msra.mxu0 %v2064
      %2094 = vmatpush.msra.mxu0 %v2063
      %2095 = vmatmul.f32.gmra.mxu0 %v2031
      %v2096 = vpop.f32.mrf.mxu0
      %v2097 = vadd.f32 0.0, %v2096
      %2098 = vmatmul.f32.gmra.mxu0 %v2032
      %v2099 = vpop.f32.mrf.mxu0
      %v2100 = vadd.f32 0.0, %v2099
      %2101 = vmatmul.f32.gmra.mxu0 %v2033
      %v2102 = vpop.f32.mrf.mxu0
      %v2103 = vadd.f32 0.0, %v2102
      %2104 = vmatmul.f32.gmra.mxu0 %v2034
      %v2105 = vpop.f32.mrf.mxu0
      %v2106 = vadd.f32 0.0, %v2105
      %2107 = vmatmul.f32.gmra.mxu0 %v2035
      %v2108 = vpop.f32.mrf.mxu0
      %v2109 = vadd.f32 0.0, %v2108
      %2110 = vmatmul.f32.gmra.mxu0 %v2036
      %v2111 = vpop.f32.mrf.mxu0
      %v2112 = vadd.f32 0.0, %v2111
      %2113 = vmatmul.f32.gmra.mxu0 %v2037
      %v2114 = vpop.f32.mrf.mxu0
      %v2115 = vadd.f32 0.0, %v2114
      %2116 = vmatmul.f32.gmra.mxu0 %v2038
      %v2117 = vpop.f32.mrf.mxu0
      %v2118 = vadd.f32 0.0, %v2117
      %2119 = vmatmul.f32.gmra.mxu0 %v2039
      %v2120 = vpop.f32.mrf.mxu0
      %v2121 = vadd.f32 0.0, %v2120
      %2122 = vmatmul.f32.gmra.mxu0 %v2040
      %v2123 = vpop.f32.mrf.mxu0
      %v2124 = vadd.f32 0.0, %v2123
      %2125 = vmatmul.f32.gmra.mxu0 %v2041
      %v2126 = vpop.f32.mrf.mxu0
      %v2127 = vadd.f32 0.0, %v2126
      %2128 = vmatmul.f32.gmra.mxu0 %v2042
      %v2129 = vpop.f32.mrf.mxu0
      %v2130 = vadd.f32 0.0, %v2129
      %2131 = vmatmul.f32.gmra.mxu0 %v2043
      %v2132 = vpop.f32.mrf.mxu0
      %v2133 = vadd.f32 0.0, %v2132
      %2134 = vmatmul.f32.gmra.mxu0 %v2044
      %v2135 = vpop.f32.mrf.mxu0
      %v2136 = vadd.f32 0.0, %v2135
      %2137 = vmatmul.f32.gmra.mxu0 %v2045
      %v2138 = vpop.f32.mrf.mxu0
      %v2139 = vadd.f32 0.0, %v2138
      %2140 = vmatmul.f32.gmra.mxu0 %v2046
      %v2141 = vpop.f32.mrf.mxu0
      %v2142 = vadd.f32 0.0, %v2141
      %2143 = vmatmul.f32.gmra.mxu0 %v2047
      %v2144 = vpop.f32.mrf.mxu0
      %v2145 = vadd.f32 0.0, %v2144
      %2146 = vmatmul.f32.gmra.mxu0 %v2048
      %v2147 = vpop.f32.mrf.mxu0
      %v2148 = vadd.f32 0.0, %v2147
      %2149 = vmatmul.f32.gmra.mxu0 %v2049
      %v2150 = vpop.f32.mrf.mxu0
      %v2151 = vadd.f32 0.0, %v2150
      %2152 = vmatmul.f32.gmra.mxu0 %v2050
      %v2153 = vpop.f32.mrf.mxu0
      %v2154 = vadd.f32 0.0, %v2153
      %2155 = vmatmul.f32.gmra.mxu0 %v2051
      %v2156 = vpop.f32.mrf.mxu0
      %v2157 = vadd.f32 0.0, %v2156
      %2158 = vmatmul.f32.gmra.mxu0 %v2052
      %v2159 = vpop.f32.mrf.mxu0
      %v2160 = vadd.f32 0.0, %v2159
      %2161 = vmatmul.f32.gmra.mxu0 %v2053
      %v2162 = vpop.f32.mrf.mxu0
      %v2163 = vadd.f32 0.0, %v2162
      %2164 = vmatmul.f32.gmra.mxu0 %v2054
      %v2165 = vpop.f32.mrf.mxu0
      %v2166 = vadd.f32 0.0, %v2165
      %2167 = vmatmul.f32.gmra.mxu0 %v2055
      %v2168 = vpop.f32.mrf.mxu0
      %v2169 = vadd.f32 0.0, %v2168
      %2170 = vmatmul.f32.gmra.mxu0 %v2056
      %v2171 = vpop.f32.mrf.mxu0
      %v2172 = vadd.f32 0.0, %v2171
      %2173 = vmatmul.f32.gmra.mxu0 %v2057
      %v2174 = vpop.f32.mrf.mxu0
      %v2175 = vadd.f32 0.0, %v2174
      %2176 = vmatmul.f32.gmra.mxu0 %v2058
      %v2177 = vpop.f32.mrf.mxu0
      %v2178 = vadd.f32 0.0, %v2177
      %2179 = vmatmul.f32.gmra.mxu0 %v2059
      %v2180 = vpop.f32.mrf.mxu0
      %v2181 = vadd.f32 0.0, %v2180
      %2182 = vmatmul.f32.gmra.mxu0 %v2060
      %v2183 = vpop.f32.mrf.mxu0
      %v2184 = vadd.f32 0.0, %v2183
      %2185 = vmatmul.f32.gmra.mxu0 %v2061
      %v2186 = vpop.f32.mrf.mxu0
      %v2187 = vadd.f32 0.0, %v2186
      %2188 = vmatmul.f32.gmra.mxu0 %v2062
      %v2189 = vpop.f32.mrf.mxu0
      %v2190 = vadd.f32 0.0, %v2189
      %2191 = vdwg.mxu0
      %v2192 = vld [vmem:[%s9] sm:$0x1]
      %v2194 = vperm.slane %v2192, 0
      %v2196 = vmul.f32 %v2097, %v2194
      %v2197 = vmul.f32 %v2100, %v2194
      %v2198 = vmul.f32 %v2103, %v2194
      %v2199 = vmul.f32 %v2106, %v2194
      %v2200 = vmul.f32 %v2109, %v2194
      %v2201 = vmul.f32 %v2112, %v2194
      %v2202 = vmul.f32 %v2115, %v2194
      %v2203 = vmul.f32 %v2118, %v2194
      %v2204 = vmul.f32 %v2121, %v2194
      %v2205 = vmul.f32 %v2124, %v2194
      %v2206 = vmul.f32 %v2127, %v2194
      %v2207 = vmul.f32 %v2130, %v2194
      %v2208 = vmul.f32 %v2133, %v2194
      %v2209 = vmul.f32 %v2136, %v2194
      %v2210 = vmul.f32 %v2139, %v2194
      %v2211 = vmul.f32 %v2142, %v2194
      %v2212 = vmul.f32 %v2145, %v2194
      %v2213 = vmul.f32 %v2148, %v2194
      %v2214 = vmul.f32 %v2151, %v2194
      %v2215 = vmul.f32 %v2154, %v2194
      %v2216 = vmul.f32 %v2157, %v2194
      %v2217 = vmul.f32 %v2160, %v2194
      %v2218 = vmul.f32 %v2163, %v2194
      %v2219 = vmul.f32 %v2166, %v2194
      %v2220 = vmul.f32 %v2169, %v2194
      %v2221 = vmul.f32 %v2172, %v2194
      %v2222 = vmul.f32 %v2175, %v2194
      %v2223 = vmul.f32 %v2178, %v2194
      %v2224 = vmul.f32 %v2181, %v2194
      %v2225 = vmul.f32 %v2184, %v2194
      %v2226 = vmul.f32 %v2187, %v2194
      %v2227 = vmul.f32 %v2190, %v2194
      %v2228 = vld [vmem:[%s10] sm:$0x1]
      %v2230 = vperm.slane %v2228, 0
      %v2232 = vadd.f32 %v2196, %v2230
      %v2233 = vadd.f32 %v2197, %v2230
      %v2234 = vadd.f32 %v2198, %v2230
      %v2235 = vadd.f32 %v2199, %v2230
      %v2236 = vadd.f32 %v2200, %v2230
      %v2237 = vadd.f32 %v2201, %v2230
      %v2238 = vadd.f32 %v2202, %v2230
      %v2239 = vadd.f32 %v2203, %v2230
      %v2240 = vadd.f32 %v2204, %v2230
      %v2241 = vadd.f32 %v2205, %v2230
      %v2242 = vadd.f32 %v2206, %v2230
      %v2243 = vadd.f32 %v2207, %v2230
      %v2244 = vadd.f32 %v2208, %v2230
      %v2245 = vadd.f32 %v2209, %v2230
      %v2246 = vadd.f32 %v2210, %v2230
      %v2247 = vadd.f32 %v2211, %v2230
      %v2248 = vadd.f32 %v2212, %v2230
      %v2249 = vadd.f32 %v2213, %v2230
      %v2250 = vadd.f32 %v2214, %v2230
      %v2251 = vadd.f32 %v2215, %v2230
      %v2252 = vadd.f32 %v2216, %v2230
      %v2253 = vadd.f32 %v2217, %v2230
      %v2254 = vadd.f32 %v2218, %v2230
      %v2255 = vadd.f32 %v2219, %v2230
      %v2256 = vadd.f32 %v2220, %v2230
      %v2257 = vadd.f32 %v2221, %v2230
      %v2258 = vadd.f32 %v2222, %v2230
      %v2259 = vadd.f32 %v2223, %v2230
      %v2260 = vadd.f32 %v2224, %v2230
      %v2261 = vadd.f32 %v2225, %v2230
      %v2262 = vadd.f32 %v2226, %v2230
      %v2263 = vadd.f32 %v2227, %v2230
      %v2264 = vld [vmem:[%s11] sm:$0xf]
      %vm2265 = vcmask 31744
      %v2266 = vsel %vm2265, %v447, 0
      %v2268 = vsel %vm2265, %v448, 0
      %v2270 = vsel %vm2265, %v449, 0
      %v2272 = vsel %vm2265, %v450, 0
      %v2274 = vsel %vm2265, %v451, 0
      %v2276 = vsel %vm2265, %v452, 0
      %v2278 = vsel %vm2265, %v453, 0
      %v2280 = vsel %vm2265, %v454, 0
      %v2282 = vsel %vm2265, %v455, 0
      %v2284 = vsel %vm2265, %v456, 0
      %v2286 = vsel %vm2265, %v457, 0
      %v2288 = vsel %vm2265, %v458, 0
      %v2290 = vsel %vm2265, %v459, 0
      %v2292 = vsel %vm2265, %v460, 0
      %v2294 = vsel %vm2265, %v461, 0
      %v2296 = vsel %vm2265, %v462, 0
      %v2298 = vsel %vm2265, %v463, 0
      %v2300 = vsel %vm2265, %v464, 0
      %v2302 = vsel %vm2265, %v465, 0
      %v2304 = vsel %vm2265, %v466, 0
      %v2306 = vsel %vm2265, %v467, 0
      %v2308 = vsel %vm2265, %v468, 0
      %v2310 = vsel %vm2265, %v469, 0
      %v2312 = vsel %vm2265, %v470, 0
      %v2314 = vsel %vm2265, %v471, 0
      %v2316 = vsel %vm2265, %v472, 0
      %v2318 = vsel %vm2265, %v473, 0
      %v2320 = vsel %vm2265, %v474, 0
      %v2322 = vsel %vm2265, %v475, 0
      %v2324 = vsel %vm2265, %v476, 0
      %v2326 = vsel %vm2265, %v477, 0
      %v2328 = vsel %vm2265, %v478, 0
      %v2331 = vsel %vm614, %v2264, 0
      %2333 = vmatpush.msra.mxu0 0.0
      %2334 = vmatpush.msra.mxu0 0.0
      %2335 = vmatpush.msra.mxu0 0.0
      %2336 = vmatpush.msra.mxu0 0.0
      %2337 = vmatpush.msra.mxu0 0.0
      %2338 = vmatpush.msra.mxu0 0.0
      %2339 = vmatpush.msra.mxu0 0.0
      %2340 = vmatpush.msra.mxu0 0.0
      %2341 = vmatpush.msra.mxu0 0.0
      %2342 = vmatpush.msra.mxu0 0.0
      %2343 = vmatpush.msra.mxu0 0.0
      %2344 = vmatpush.msra.mxu0 0.0
      %2345 = vmatpush.msra.mxu0 0.0
      %2346 = vmatpush.msra.mxu0 0.0
      %2347 = vmatpush.msra.mxu0 0.0
      %2348 = vmatpush.msra.mxu0 %v2331
      %2349 = vmatmul.f32.gmra.mxu0 %v2266
      %v2350 = vpop.f32.mrf.mxu0
      %v2351 = vadd.f32 0.0, %v2350
      %2352 = vmatmul.f32.gmra.mxu0 %v2268
      %v2353 = vpop.f32.mrf.mxu0
      %v2354 = vadd.f32 0.0, %v2353
      %2355 = vmatmul.f32.gmra.mxu0 %v2270
      %v2356 = vpop.f32.mrf.mxu0
      %v2357 = vadd.f32 0.0, %v2356
      %2358 = vmatmul.f32.gmra.mxu0 %v2272
      %v2359 = vpop.f32.mrf.mxu0
      %v2360 = vadd.f32 0.0, %v2359
      %2361 = vmatmul.f32.gmra.mxu0 %v2274
      %v2362 = vpop.f32.mrf.mxu0
      %v2363 = vadd.f32 0.0, %v2362
      %2364 = vmatmul.f32.gmra.mxu0 %v2276
      %v2365 = vpop.f32.mrf.mxu0
      %v2366 = vadd.f32 0.0, %v2365
      %2367 = vmatmul.f32.gmra.mxu0 %v2278
      %v2368 = vpop.f32.mrf.mxu0
      %v2369 = vadd.f32 0.0, %v2368
      %2370 = vmatmul.f32.gmra.mxu0 %v2280
      %v2371 = vpop.f32.mrf.mxu0
      %v2372 = vadd.f32 0.0, %v2371
      %2373 = vmatmul.f32.gmra.mxu0 %v2282
      %v2374 = vpop.f32.mrf.mxu0
      %v2375 = vadd.f32 0.0, %v2374
      %2376 = vmatmul.f32.gmra.mxu0 %v2284
      %v2377 = vpop.f32.mrf.mxu0
      %v2378 = vadd.f32 0.0, %v2377
      %2379 = vmatmul.f32.gmra.mxu0 %v2286
      %v2380 = vpop.f32.mrf.mxu0
      %v2381 = vadd.f32 0.0, %v2380
      %2382 = vmatmul.f32.gmra.mxu0 %v2288
      %v2383 = vpop.f32.mrf.mxu0
      %v2384 = vadd.f32 0.0, %v2383
      %2385 = vmatmul.f32.gmra.mxu0 %v2290
      %v2386 = vpop.f32.mrf.mxu0
      %v2387 = vadd.f32 0.0, %v2386
      %2388 = vmatmul.f32.gmra.mxu0 %v2292
      %v2389 = vpop.f32.mrf.mxu0
      %v2390 = vadd.f32 0.0, %v2389
      %2391 = vmatmul.f32.gmra.mxu0 %v2294
      %v2392 = vpop.f32.mrf.mxu0
      %v2393 = vadd.f32 0.0, %v2392
      %2394 = vmatmul.f32.gmra.mxu0 %v2296
      %v2395 = vpop.f32.mrf.mxu0
      %v2396 = vadd.f32 0.0, %v2395
      %2397 = vmatmul.f32.gmra.mxu0 %v2298
      %v2398 = vpop.f32.mrf.mxu0
      %v2399 = vadd.f32 0.0, %v2398
      %2400 = vmatmul.f32.gmra.mxu0 %v2300
      %v2401 = vpop.f32.mrf.mxu0
      %v2402 = vadd.f32 0.0, %v2401
      %2403 = vmatmul.f32.gmra.mxu0 %v2302
      %v2404 = vpop.f32.mrf.mxu0
      %v2405 = vadd.f32 0.0, %v2404
      %2406 = vmatmul.f32.gmra.mxu0 %v2304
      %v2407 = vpop.f32.mrf.mxu0
      %v2408 = vadd.f32 0.0, %v2407
      %2409 = vmatmul.f32.gmra.mxu0 %v2306
      %v2410 = vpop.f32.mrf.mxu0
      %v2411 = vadd.f32 0.0, %v2410
      %2412 = vmatmul.f32.gmra.mxu0 %v2308
      %v2413 = vpop.f32.mrf.mxu0
      %v2414 = vadd.f32 0.0, %v2413
      %2415 = vmatmul.f32.gmra.mxu0 %v2310
      %v2416 = vpop.f32.mrf.mxu0
      %v2417 = vadd.f32 0.0, %v2416
      %2418 = vmatmul.f32.gmra.mxu0 %v2312
      %v2419 = vpop.f32.mrf.mxu0
      %v2420 = vadd.f32 0.0, %v2419
      %2421 = vmatmul.f32.gmra.mxu0 %v2314
      %v2422 = vpop.f32.mrf.mxu0
      %v2423 = vadd.f32 0.0, %v2422
      %2424 = vmatmul.f32.gmra.mxu0 %v2316
      %v2425 = vpop.f32.mrf.mxu0
      %v2426 = vadd.f32 0.0, %v2425
      %2427 = vmatmul.f32.gmra.mxu0 %v2318
      %v2428 = vpop.f32.mrf.mxu0
      %v2429 = vadd.f32 0.0, %v2428
      %2430 = vmatmul.f32.gmra.mxu0 %v2320
      %v2431 = vpop.f32.mrf.mxu0
      %v2432 = vadd.f32 0.0, %v2431
      %2433 = vmatmul.f32.gmra.mxu0 %v2322
      %v2434 = vpop.f32.mrf.mxu0
      %v2435 = vadd.f32 0.0, %v2434
      %2436 = vmatmul.f32.gmra.mxu0 %v2324
      %v2437 = vpop.f32.mrf.mxu0
      %v2438 = vadd.f32 0.0, %v2437
      %2439 = vmatmul.f32.gmra.mxu0 %v2326
      %v2440 = vpop.f32.mrf.mxu0
      %v2441 = vadd.f32 0.0, %v2440
      %2442 = vmatmul.f32.gmra.mxu0 %v2328
      %v2443 = vpop.f32.mrf.mxu0
      %v2444 = vadd.f32 0.0, %v2443
      %2445 = vdwg.mxu0
      %v2446 = vadd.f32 %v2232, %v2351
      %v2447 = vadd.f32 %v2233, %v2354
      %v2448 = vadd.f32 %v2234, %v2357
      %v2449 = vadd.f32 %v2235, %v2360
      %v2450 = vadd.f32 %v2236, %v2363
      %v2451 = vadd.f32 %v2237, %v2366
      %v2452 = vadd.f32 %v2238, %v2369
      %v2453 = vadd.f32 %v2239, %v2372
      %v2454 = vadd.f32 %v2240, %v2375
      %v2455 = vadd.f32 %v2241, %v2378
      %v2456 = vadd.f32 %v2242, %v2381
      %v2457 = vadd.f32 %v2243, %v2384
      %v2458 = vadd.f32 %v2244, %v2387
      %v2459 = vadd.f32 %v2245, %v2390
      %v2460 = vadd.f32 %v2246, %v2393
      %v2461 = vadd.f32 %v2247, %v2396
      %v2462 = vadd.f32 %v2248, %v2399
      %v2463 = vadd.f32 %v2249, %v2402
      %v2464 = vadd.f32 %v2250, %v2405
      %v2465 = vadd.f32 %v2251, %v2408
      %v2466 = vadd.f32 %v2252, %v2411
      %v2467 = vadd.f32 %v2253, %v2414
      %v2468 = vadd.f32 %v2254, %v2417
      %v2469 = vadd.f32 %v2255, %v2420
      %v2470 = vadd.f32 %v2256, %v2423
      %v2471 = vadd.f32 %v2257, %v2426
      %v2472 = vadd.f32 %v2258, %v2429
      %v2473 = vadd.f32 %v2259, %v2432
      %v2474 = vadd.f32 %v2260, %v2435
      %v2475 = vadd.f32 %v2261, %v2438
      %v2476 = vadd.f32 %v2262, %v2441
      %v2477 = vadd.f32 %v2263, %v2444
      %2478 = vst [vmem:[%s413] sm:$0xff] %v2446
      %2479 = vst [vmem:[%s413 + $0x8] sm:$0xff] %v2447
      %2480 = vst [vmem:[%s413 + $0x10] sm:$0xff] %v2448
      %2481 = vst [vmem:[%s413 + $0x18] sm:$0xff] %v2449
      %2482 = vst [vmem:[%s413 + $0x20] sm:$0xff] %v2450
      %2483 = vst [vmem:[%s413 + $0x28] sm:$0xff] %v2451
      %2484 = vst [vmem:[%s413 + $0x30] sm:$0xff] %v2452
      %2485 = vst [vmem:[%s413 + $0x38] sm:$0xff] %v2453
      %2486 = vst [vmem:[%s413 + $0x40] sm:$0xff] %v2454
      %2487 = vst [vmem:[%s413 + $0x48] sm:$0xff] %v2455
      %2488 = vst [vmem:[%s413 + $0x50] sm:$0xff] %v2456
      %2489 = vst [vmem:[%s413 + $0x58] sm:$0xff] %v2457
      %2490 = vst [vmem:[%s413 + $0x60] sm:$0xff] %v2458
      %2491 = vst [vmem:[%s413 + $0x68] sm:$0xff] %v2459
      %2492 = vst [vmem:[%s413 + $0x70] sm:$0xff] %v2460
      %2493 = vst [vmem:[%s413 + $0x78] sm:$0xff] %v2461
      %2494 = vst [vmem:[%s413 + $0x80] sm:$0xff] %v2462
      %2495 = vst [vmem:[%s413 + $0x88] sm:$0xff] %v2463
      %2496 = vst [vmem:[%s413 + $0x90] sm:$0xff] %v2464
      %2497 = vst [vmem:[%s413 + $0x98] sm:$0xff] %v2465
      %2498 = vst [vmem:[%s413 + $0xa0] sm:$0xff] %v2466
      %2499 = vst [vmem:[%s413 + $0xa8] sm:$0xff] %v2467
      %2500 = vst [vmem:[%s413 + $0xb0] sm:$0xff] %v2468
      %2501 = vst [vmem:[%s413 + $0xb8] sm:$0xff] %v2469
      %2502 = vst [vmem:[%s413 + $0xc0] sm:$0xff] %v2470
      %2503 = vst [vmem:[%s413 + $0xc8] sm:$0xff] %v2471
      %2504 = vst [vmem:[%s413 + $0xd0] sm:$0xff] %v2472
      %2505 = vst [vmem:[%s413 + $0xd8] sm:$0xff] %v2473
      %2506 = vst [vmem:[%s413 + $0xe0] sm:$0xff] %v2474
      %2507 = vst [vmem:[%s413 + $0xe8] sm:$0xff] %v2475
      %2508 = vst [vmem:[%s413 + $0xf0] sm:$0xff] %v2476
      %2509 = vst [vmem:[%s413 + $0xf8] sm:$0xff] %v2477
      %p2510 = scmp.lt.s32.totalorder %s23, 1
      %s2511 = scalar_select %p2510, %s23, 1
      %s2512 = smul.addr %s2511, 32
      %s2513 = smul.addr %s2512, 8
      %s2514 = scalar_lea.vmem %s12, %s2513
      // Predicated region
      $region69: #{fused_mbconv_forward.1} parent=67 // pred_check
        %p2515 = pneg %p298
      $region70: #{fused_mbconv_forward.1} parent=67 // pred_check_branch
        %2517 = sbr.rel (%p2515) target = $region72
      $region71: #{fused_mbconv_forward.1} parent=67 // pred_region
        _
      $region72: #{fused_mbconv_forward.1} parent=67 // pred_fallthru
        _
    $region68: #{fused_mbconv_forward.1} parent=5 // pred_fallthru
      _
    %p2518 = scmp.le.s32.totalorder 2, %s18
    // Predicated region
    $region73: #{fused_mbconv_forward.1} parent=5 // pred_check
      %p2519 = pneg %p2518
    $region74: #{fused_mbconv_forward.1} parent=5 // pred_check_branch
      %2521 = sbr.rel (%p2519) target = $region76
    $region75: #{fused_mbconv_forward.1} parent=5 // pred_region
      %s2522 = ssub.s32 %s18, 2
      // Predicated region
      $region77: #{fused_mbconv_forward.1} parent=75 // pred_check
        %p2523 = pneg %p304
      $region78: #{fused_mbconv_forward.1} parent=75 // pred_check_branch
        %2525 = sbr.rel (%p2523) target = $region80
      $region79: #{fused_mbconv_forward.1} parent=75 // pred_region
        %p2526 = scmp.lt.s32.totalorder %s24, 1
        %s2527 = scalar_select %p2526, %s24, 1
        %s2528 = smul.addr %s2527, 32
        %s2529 = smul.addr %s2528, 8
        %s2530 = scalar_lea.vmem %s12, %s2529
      $region80: #{fused_mbconv_forward.1} parent=75 // pred_fallthru
        _
    $region76: #{fused_mbconv_forward.1} parent=5 // pred_fallthru
      _
  $region6: #{fused_mbconv_forward.1} parent=0 // loop_footer
    %s22 = sadd.s32 1, %s18
  $region7: #{fused_mbconv_forward.1} parent=0 // loop_footer_branch
    %17 = sbr.rel target = $region3
  $region8: #{fused_mbconv_forward.1} parent=0 // loop_exit
    _

</llo_original>
